<compile_context>
chip_gen: v7x
topology: tpu7x:2x2x1
jax: 0.10.0
libtpu: 0.0.40
codegen_flags: <defaults>
</compile_context>

<pallas_src>
import numpy as np
import jax
import jax.numpy as jnp
from jax import lax
from jax.experimental import pallas as pl
from jax.experimental.pallas import tpu as pltpu


def final_upsampler(x, y, weight, bias, *, tile_l=None):
    """WaveUNet FinalUpsampler forward.

    x: (B, Cx, L), y: (B, Cy, L)         (concatenated on the channel axis)
    weight: (K, Cx+Cy, ks), bias: (K,)   (PyTorch Conv1d layout)
    returns tanh(conv1d(cat([x, y], 1), W, b, padding='same')): (B, K, L)
    """
    B, Cx, L = x.shape
    By, Cy, Ly = y.shape
    assert B == By and L == Ly
    K, Cin, ks = weight.shape
    assert Cin == Cx + Cy

    # PyTorch 'same' padding (stride 1): total = ks-1, left = total//2.
    left = (ks - 1) // 2
    right = (ks - 1) - left

    # Length tile: large enough for good DMA/compute overlap, small enough
    # that double-buffered tiles stay far below the 32 MiB scoped-VMEM default
    # on every generation (incl. v7x).  Must be a multiple of 128 (lane-dense
    # stores) or equal to L.
    if tile_l is None:
        tile_l = L if L <= 2048 else 2048
    tile_l = min(tile_l, L)
    if tile_l != L and tile_l % 128 != 0:
        raise ValueError("tile_l must equal L or be a multiple of 128")
    TL = tile_l
    nL = (L + TL - 1) // TL          # number of length tiles (last may be ragged)
    Wwin = TL + ks - 1               # carried halo window width

    out_dtype = jnp.result_type(x.dtype, y.dtype)

    # Split the conv weight into x-/y-channel halves (tiny arrays); this is
    # what lets us skip the HBM concat of the activations entirely.
    wx = weight[:, :Cx, :]
    wy = weight[:, Cx:, :]
    bias2d = bias.reshape(K, 1)

    def kernel(x_ref, y_ref, wx_ref, wy_ref, b_ref, o_ref, winx_ref, winy_ref):
        # x_ref: (Cx, TL)   tile min(i, nL-1) of x      (batch dim squeezed)
        # y_ref: (Cy, TL)   tile min(i, nL-1) of y
        # wx_ref: (K, Cx, ks), wy_ref: (K, Cy, ks), b_ref: (K, 1)
        # o_ref: (K, TL)    output tile i-1 (one-tile delay)
        # winx_ref/winy_ref: (C, TL+ks-1) carried window, layout
        #   [ last `left` cols of tile i-2 | tile i-1 | first `right` cols of tile i ]
        i = pl.program_id(1)

        # Mask the freshly loaded tile against the true length L.  This zeroes
        # (a) the ragged tail of the last tile and (b) the whole "one past the
        # end" re-read at i == nL, which is exactly the 'same' zero padding.
        col = lax.broadcasted_iota(jnp.int32, (1, TL), 1)
        valid = (i * TL + col) < L
        cur_x = jnp.where(valid, x_ref[...].astype(jnp.float32), 0.0)
        cur_y = jnp.where(valid, y_ref[...].astype(jnp.float32), 0.0)

        # (1) Right halo of the window for output tile i-1 = head of tile i.
        if right > 0:
            winx_ref[:, left + TL:left + TL + right] = cur_x[:, :right]
            winy_ref[:, left + TL:left + TL + right] = cur_y[:, :right]

        # (2) Compute output tile i-1 (skipped at the priming step i == 0;
        #     the revisited output block is fully overwritten at i == 1 before
        #     any HBM write-back happens).
        @pl.when(i > 0)
        def _compute():
            wvx = winx_ref[...]                        # (Cx, Wwin) f32
            wvy = winy_ref[...]                        # (Cy, Wwin) f32
            wxv = wx_ref[...].astype(jnp.float32)      # (K, Cx, ks)
            wyv = wy_ref[...].astype(jnp.float32)      # (K, Cy, ks)
            # f32 accumulator initialised with the bias (saves a full-tile add).
            acc = jnp.broadcast_to(b_ref[...].astype(jnp.float32), (K, TL))
            # Tiny channel counts: VPU broadcast-FMAs instead of (K,Cin)x(Cin,TL)
            # MXU matmuls that would be almost all padding on a 256-wide MXU.
            for t in range(ks):
                sx = wvx[:, t:t + TL]                  # lane-shifted tap view
                for c in range(Cx):
                    acc = acc + wxv[:, c, t][:, None] * sx[c][None, :]
                sy = wvy[:, t:t + TL]
                for c in range(Cy):
                    acc = acc + wyv[:, c, t][:, None] * sy[c][None, :]
            # tanh on the EUP, lane-dense (K, TL) store fused with the cast.
            o_ref[...] = jnp.tanh(acc).astype(o_ref.dtype)

        # (3) Slide the window for the next step: new left halo = tail of the
        #     current main body (zeros when this is the first tile of a batch),
        #     new main body = the (masked) tile just loaded.
        if left > 0:
            tail_x = winx_ref[:, TL:TL + left]
            tail_y = winy_ref[:, TL:TL + left]
            winx_ref[:, 0:left] = jnp.where(i > 0, tail_x, jnp.zeros_like(tail_x))
            winy_ref[:, 0:left] = jnp.where(i > 0, tail_y, jnp.zeros_like(tail_y))
        winx_ref[:, left:left + TL] = cur_x
        winy_ref[:, left:left + TL] = cur_y

    grid = (B, nL + 1)   # +1 priming step because output lags input by one tile

    x_spec = pl.BlockSpec((None, Cx, TL),
                          lambda b, i: (b, 0, jnp.minimum(i, nL - 1)))
    y_spec = pl.BlockSpec((None, Cy, TL),
                          lambda b, i: (b, 0, jnp.minimum(i, nL - 1)))
    wx_spec = pl.BlockSpec((K, Cx, ks), lambda b, i: (0, 0, 0))
    wy_spec = pl.BlockSpec((K, Cy, ks), lambda b, i: (0, 0, 0))
    b_spec = pl.BlockSpec((K, 1), lambda b, i: (0, 0))
    o_spec = pl.BlockSpec((None, K, TL),
                          lambda b, i: (b, 0, jnp.maximum(i - 1, 0)))

    out = pl.pallas_call(
        kernel,
        out_shape=jax.ShapeDtypeStruct((B, K, L), out_dtype),
        grid_spec=pltpu.PrefetchScalarGridSpec(
            num_scalar_prefetch=0,
            grid=grid,
            in_specs=[x_spec, y_spec, wx_spec, wy_spec, b_spec],
            out_specs=o_spec,
            scratch_shapes=[pltpu.VMEM((Cx, Wwin), jnp.float32),
                            pltpu.VMEM((Cy, Wwin), jnp.float32)]),
        compiler_params=pltpu.CompilerParams(
            # Batch axis can be split across v7x's two TensorCores; the length
            # axis carries the halo window, so it must stay sequential.
            dimension_semantics=("parallel", "arbitrary")),
    )(x, y, wx, wy, bias2d)
    return out


def _reference(x, y, weight, bias):
    z = jnp.concatenate([x, y], axis=1)
    ks = weight.shape[2]
    total = ks - 1
    left = total // 2
    out = lax.conv_general_dilated(
        z, weight, window_strides=(1,),
        padding=[(left, total - left)],
        dimension_numbers=("NCH", "OIH", "NCH"))
    return jnp.tanh(out + bias[None, :, None])


if __name__ == "__main__":
    # Small shapes consistent with the module: two branches concatenated on
    # the channel axis; in_channels = Cx + Cy, K output channels, odd kernel.
    B, Cx, Cy, L = 2, 3, 2, 512
    K, ks = 4, 5
    Cin = Cx + Cy

    key = jax.random.PRNGKey(0)
    kx, ky, kw, kb = jax.random.split(key, 4)
    x = jax.random.normal(kx, (B, Cx, L), dtype=jnp.float32)
    y = jax.random.normal(ky, (B, Cy, L), dtype=jnp.float32)
    # PyTorch Conv1d-style parameter shapes/init: (K, Cin, ks), (K,)
    fan_in = Cin * ks
    bound = 1.0 / np.sqrt(fan_in)
    weight = jax.random.uniform(kw, (K, Cin, ks), minval=-bound, maxval=bound,
                                dtype=jnp.float32)
    bias = jax.random.uniform(kb, (K,), minval=-bound, maxval=bound,
                              dtype=jnp.float32)

    # tile_l=128 exercises the multi-tile halo-carry path even at this small L.
    out = final_upsampler(x, y, weight, bias, tile_l=128)
    out = jax.block_until_ready(out)

    ref = jax.block_until_ready(_reference(x, y, weight, bias))
    np.testing.assert_allclose(np.asarray(out), np.asarray(ref),
                               rtol=1e-5, atol=1e-5)
    print("KERNEL_OK")
</pallas_src>

<mosaic_0001>
module attributes {stable_mosaic.version = 11 : i64} {
  func.func @kernel(%arg0: i32, %arg1: i32, %arg2: memref<1x3x128xf32, #tpu.memory_space<vmem>>, %arg3: memref<1x2x128xf32, #tpu.memory_space<vmem>>, %arg4: memref<4x3x5xf32, #tpu.memory_space<vmem>>, %arg5: memref<4x2x5xf32, #tpu.memory_space<vmem>>, %arg6: memref<4x1xf32, #tpu.memory_space<vmem>>, %arg7: memref<1x4x128xf32, #tpu.memory_space<vmem>>, %arg8: memref<3x132xf32, #tpu.memory_space<vmem>>, %arg9: memref<2x132xf32, #tpu.memory_space<vmem>>) attributes {dimension_semantics = [#tpu.dimension_semantics<parallel>, #tpu.dimension_semantics<arbitrary>], iteration_bounds = array<i64: 2, 5>, scalar_prefetch = 0 : i64, scratch_operands = 2 : i64, tpu.core_type = #tpu.core_type<tc>, window_params = [{transform_indices = @transform_0, window_bounds = array<i64: 1, 3, 128>}, {transform_indices = @transform_1, window_bounds = array<i64: 1, 2, 128>}, {pipeline_mode = #tpu.pipeline_mode<synchronous>, transform_indices = @transform_2, window_bounds = array<i64: 4, 3, 5>}, {pipeline_mode = #tpu.pipeline_mode<synchronous>, transform_indices = @transform_3, window_bounds = array<i64: 4, 2, 5>}, {pipeline_mode = #tpu.pipeline_mode<synchronous>, transform_indices = @transform_4, window_bounds = array<i64: 4, 1>}, {transform_indices = @transform_5, window_bounds = array<i64: 1, 4, 128>}]} {
    %0 = tpu.iota {dimensions = array<i32: 1>} : vector<1x128xi32>
    %c128_i32 = arith.constant 128 : i32
    %1 = arith.muli %arg1, %c128_i32 : i32
    %2 = vector.broadcast %1 : i32 to vector<1x128xi32>
    %3 = arith.addi %2, %0 : vector<1x128xi32>
    %c512_i32 = arith.constant 512 : i32
    %4 = vector.broadcast %c512_i32 : i32 to vector<1x128xi32>
    %5 = arith.cmpi slt, %3, %4 : vector<1x128xi32>
    %c0 = arith.constant 0 : index
    %c0_0 = arith.constant 0 : index
    %c0_1 = arith.constant 0 : index
    %6 = vector.load %arg2[%c0, %c0_0, %c0_1] : memref<1x3x128xf32, #tpu.memory_space<vmem>>, vector<1x3x128xf32>
    %7 = vector.shape_cast %6 : vector<1x3x128xf32> to vector<3x128xf32>
    %cst = arith.constant 0.000000e+00 : f32
    %8 = vector.shape_cast %5 : vector<1x128xi1> to vector<1x128xi1>
    %9 = vector.broadcast %8 : vector<1x128xi1> to vector<3x128xi1>
    %10 = vector.broadcast %cst : f32 to vector<3x128xf32>
    %11 = arith.select %9, %7, %10 : vector<3x128xi1>, vector<3x128xf32>
    %c0_2 = arith.constant 0 : index
    %c0_3 = arith.constant 0 : index
    %c0_4 = arith.constant 0 : index
    %12 = vector.load %arg3[%c0_2, %c0_3, %c0_4] : memref<1x2x128xf32, #tpu.memory_space<vmem>>, vector<1x2x128xf32>
    %13 = vector.shape_cast %12 : vector<1x2x128xf32> to vector<2x128xf32>
    %cst_5 = arith.constant 0.000000e+00 : f32
    %14 = vector.shape_cast %5 : vector<1x128xi1> to vector<1x128xi1>
    %15 = vector.broadcast %14 : vector<1x128xi1> to vector<2x128xi1>
    %16 = vector.broadcast %cst_5 : f32 to vector<2x128xf32>
    %17 = arith.select %15, %13, %16 : vector<2x128xi1>, vector<2x128xf32>
    %18 = vector.extract_strided_slice %11 {offsets = [0, 0], sizes = [3, 2], strides = [1, 1]} : vector<3x128xf32> to vector<3x2xf32>
    %c0_6 = arith.constant 0 : index
    %c130 = arith.constant 130 : index
    %19 = vector.load %arg8[%c0_6, %c130] : memref<3x132xf32, #tpu.memory_space<vmem>>, vector<3x2xf32>
    tpu.vector_store %arg8[%c0_6, %c130], %18 {strides = array<i32>} : memref<3x132xf32, #tpu.memory_space<vmem>>, vector<3x2xf32>,
    %20 = vector.extract_strided_slice %17 {offsets = [0, 0], sizes = [2, 2], strides = [1, 1]} : vector<2x128xf32> to vector<2x2xf32>
    %c0_7 = arith.constant 0 : index
    %c130_8 = arith.constant 130 : index
    %21 = vector.load %arg9[%c0_7, %c130_8] : memref<2x132xf32, #tpu.memory_space<vmem>>, vector<2x2xf32>
    tpu.vector_store %arg9[%c0_7, %c130_8], %20 {strides = array<i32>} : memref<2x132xf32, #tpu.memory_space<vmem>>, vector<2x2xf32>,
    %c0_i32 = arith.constant 0 : i32
    %22 = arith.cmpi sgt, %arg1, %c0_i32 : i32
    %23 = arith.extui %22 : i1 to i32
    %c0_i32_9 = arith.constant 0 : i32
    %24 = arith.cmpi ne, %23, %c0_i32_9 : i32
    scf.if %24 {
      %c0_24 = arith.constant 0 : index
      %c0_25 = arith.constant 0 : index
      %37 = vector.load %arg8[%c0_24, %c0_25] : memref<3x132xf32, #tpu.memory_space<vmem>>, vector<3x132xf32>
      %c0_26 = arith.constant 0 : index
      %c0_27 = arith.constant 0 : index
      %38 = vector.load %arg9[%c0_26, %c0_27] : memref<2x132xf32, #tpu.memory_space<vmem>>, vector<2x132xf32>
      %c0_28 = arith.constant 0 : index
      %c0_29 = arith.constant 0 : index
      %c0_30 = arith.constant 0 : index
      %39 = vector.load %arg4[%c0_28, %c0_29, %c0_30] : memref<4x3x5xf32, #tpu.memory_space<vmem>>, vector<4x3x5xf32>
      %c0_31 = arith.constant 0 : index
      %c0_32 = arith.constant 0 : index
      %c0_33 = arith.constant 0 : index
      %40 = vector.load %arg5[%c0_31, %c0_32, %c0_33] : memref<4x2x5xf32, #tpu.memory_space<vmem>>, vector<4x2x5xf32>
      %c0_34 = arith.constant 0 : index
      %c0_35 = arith.constant 0 : index
      %41 = vector.load %arg6[%c0_34, %c0_35] : memref<4x1xf32, #tpu.memory_space<vmem>>, vector<4x1xf32>
      %42 = vector.shape_cast %41 : vector<4x1xf32> to vector<4x1xf32>
      %43 = vector.broadcast %42 : vector<4x1xf32> to vector<4x128xf32>
      %44 = vector.extract_strided_slice %37 {offsets = [0, 0], sizes = [3, 128], strides = [1, 1]} : vector<3x132xf32> to vector<3x128xf32>
      %45 = vector.extract_strided_slice %39 {offsets = [0, 0, 0], sizes = [4, 1, 1], strides = [1, 1, 1]} : vector<4x3x5xf32> to vector<4x1x1xf32>
      %46 = vector.shape_cast %45 : vector<4x1x1xf32> to vector<4xf32>
      %47 = vector.shape_cast %46 : vector<4xf32> to vector<4x1xf32>
      %48 = vector.extract_strided_slice %44 {offsets = [0, 0], sizes = [1, 128], strides = [1, 1]} : vector<3x128xf32> to vector<1x128xf32>
      %49 = vector.shape_cast %48 : vector<1x128xf32> to vector<128xf32>
      %50 = vector.shape_cast %49 : vector<128xf32> to vector<1x128xf32>
      %51 = vector.broadcast %47 : vector<4x1xf32> to vector<4x128xf32>
      %52 = vector.broadcast %50 : vector<1x128xf32> to vector<4x128xf32>
      %53 = arith.mulf %51, %52 : vector<4x128xf32>
      %54 = arith.addf %43, %53 : vector<4x128xf32>
      %55 = vector.extract_strided_slice %39 {offsets = [0, 1, 0], sizes = [4, 1, 1], strides = [1, 1, 1]} : vector<4x3x5xf32> to vector<4x1x1xf32>
      %56 = vector.shape_cast %55 : vector<4x1x1xf32> to vector<4xf32>
      %57 = vector.shape_cast %56 : vector<4xf32> to vector<4x1xf32>
      %58 = vector.extract_strided_slice %44 {offsets = [1, 0], sizes = [1, 128], strides = [1, 1]} : vector<3x128xf32> to vector<1x128xf32>
      %59 = vector.shape_cast %58 : vector<1x128xf32> to vector<128xf32>
      %60 = vector.shape_cast %59 : vector<128xf32> to vector<1x128xf32>
      %61 = vector.broadcast %57 : vector<4x1xf32> to vector<4x128xf32>
      %62 = vector.broadcast %60 : vector<1x128xf32> to vector<4x128xf32>
      %63 = arith.mulf %61, %62 : vector<4x128xf32>
      %64 = arith.addf %54, %63 : vector<4x128xf32>
      %65 = vector.extract_strided_slice %39 {offsets = [0, 2, 0], sizes = [4, 1, 1], strides = [1, 1, 1]} : vector<4x3x5xf32> to vector<4x1x1xf32>
      %66 = vector.shape_cast %65 : vector<4x1x1xf32> to vector<4xf32>
      %67 = vector.shape_cast %66 : vector<4xf32> to vector<4x1xf32>
      %68 = vector.extract_strided_slice %44 {offsets = [2, 0], sizes = [1, 128], strides = [1, 1]} : vector<3x128xf32> to vector<1x128xf32>
      %69 = vector.shape_cast %68 : vector<1x128xf32> to vector<128xf32>
      %70 = vector.shape_cast %69 : vector<128xf32> to vector<1x128xf32>
      %71 = vector.broadcast %67 : vector<4x1xf32> to vector<4x128xf32>
      %72 = vector.broadcast %70 : vector<1x128xf32> to vector<4x128xf32>
      %73 = arith.mulf %71, %72 : vector<4x128xf32>
      %74 = arith.addf %64, %73 : vector<4x128xf32>
      %75 = vector.extract_strided_slice %38 {offsets = [0, 0], sizes = [2, 128], strides = [1, 1]} : vector<2x132xf32> to vector<2x128xf32>
      %76 = vector.extract_strided_slice %40 {offsets = [0, 0, 0], sizes = [4, 1, 1], strides = [1, 1, 1]} : vector<4x2x5xf32> to vector<4x1x1xf32>
      %77 = vector.shape_cast %76 : vector<4x1x1xf32> to vector<4xf32>
      %78 = vector.shape_cast %77 : vector<4xf32> to vector<4x1xf32>
      %79 = vector.extract_strided_slice %75 {offsets = [0, 0], sizes = [1, 128], strides = [1, 1]} : vector<2x128xf32> to vector<1x128xf32>
      %80 = vector.shape_cast %79 : vector<1x128xf32> to vector<128xf32>
      %81 = vector.shape_cast %80 : vector<128xf32> to vector<1x128xf32>
      %82 = vector.broadcast %78 : vector<4x1xf32> to vector<4x128xf32>
      %83 = vector.broadcast %81 : vector<1x128xf32> to vector<4x128xf32>
      %84 = arith.mulf %82, %83 : vector<4x128xf32>
      %85 = arith.addf %74, %84 : vector<4x128xf32>
      %86 = vector.extract_strided_slice %40 {offsets = [0, 1, 0], sizes = [4, 1, 1], strides = [1, 1, 1]} : vector<4x2x5xf32> to vector<4x1x1xf32>
      %87 = vector.shape_cast %86 : vector<4x1x1xf32> to vector<4xf32>
      %88 = vector.shape_cast %87 : vector<4xf32> to vector<4x1xf32>
      %89 = vector.extract_strided_slice %75 {offsets = [1, 0], sizes = [1, 128], strides = [1, 1]} : vector<2x128xf32> to vector<1x128xf32>
      %90 = vector.shape_cast %89 : vector<1x128xf32> to vector<128xf32>
      %91 = vector.shape_cast %90 : vector<128xf32> to vector<1x128xf32>
      %92 = vector.broadcast %88 : vector<4x1xf32> to vector<4x128xf32>
      %93 = vector.broadcast %91 : vector<1x128xf32> to vector<4x128xf32>
      %94 = arith.mulf %92, %93 : vector<4x128xf32>
      %95 = arith.addf %85, %94 : vector<4x128xf32>
      %96 = vector.extract_strided_slice %37 {offsets = [0, 1], sizes = [3, 128], strides = [1, 1]} : vector<3x132xf32> to vector<3x128xf32>
      %97 = vector.extract_strided_slice %39 {offsets = [0, 0, 1], sizes = [4, 1, 1], strides = [1, 1, 1]} : vector<4x3x5xf32> to vector<4x1x1xf32>
      %98 = vector.shape_cast %97 : vector<4x1x1xf32> to vector<4xf32>
      %99 = vector.shape_cast %98 : vector<4xf32> to vector<4x1xf32>
      %100 = vector.extract_strided_slice %96 {offsets = [0, 0], sizes = [1, 128], strides = [1, 1]} : vector<3x128xf32> to vector<1x128xf32>
      %101 = vector.shape_cast %100 : vector<1x128xf32> to vector<128xf32>
      %102 = vector.shape_cast %101 : vector<128xf32> to vector<1x128xf32>
      %103 = vector.broadcast %99 : vector<4x1xf32> to vector<4x128xf32>
      %104 = vector.broadcast %102 : vector<1x128xf32> to vector<4x128xf32>
      %105 = arith.mulf %103, %104 : vector<4x128xf32>
      %106 = arith.addf %95, %105 : vector<4x128xf32>
      %107 = vector.extract_strided_slice %39 {offsets = [0, 1, 1], sizes = [4, 1, 1], strides = [1, 1, 1]} : vector<4x3x5xf32> to vector<4x1x1xf32>
      %108 = vector.shape_cast %107 : vector<4x1x1xf32> to vector<4xf32>
      %109 = vector.shape_cast %108 : vector<4xf32> to vector<4x1xf32>
      %110 = vector.extract_strided_slice %96 {offsets = [1, 0], sizes = [1, 128], strides = [1, 1]} : vector<3x128xf32> to vector<1x128xf32>
      %111 = vector.shape_cast %110 : vector<1x128xf32> to vector<128xf32>
      %112 = vector.shape_cast %111 : vector<128xf32> to vector<1x128xf32>
      %113 = vector.broadcast %109 : vector<4x1xf32> to vector<4x128xf32>
      %114 = vector.broadcast %112 : vector<1x128xf32> to vector<4x128xf32>
      %115 = arith.mulf %113, %114 : vector<4x128xf32>
      %116 = arith.addf %106, %115 : vector<4x128xf32>
      %117 = vector.extract_strided_slice %39 {offsets = [0, 2, 1], sizes = [4, 1, 1], strides = [1, 1, 1]} : vector<4x3x5xf32> to vector<4x1x1xf32>
      %118 = vector.shape_cast %117 : vector<4x1x1xf32> to vector<4xf32>
      %119 = vector.shape_cast %118 : vector<4xf32> to vector<4x1xf32>
      %120 = vector.extract_strided_slice %96 {offsets = [2, 0], sizes = [1, 128], strides = [1, 1]} : vector<3x128xf32> to vector<1x128xf32>
      %121 = vector.shape_cast %120 : vector<1x128xf32> to vector<128xf32>
      %122 = vector.shape_cast %121 : vector<128xf32> to vector<1x128xf32>
      %123 = vector.broadcast %119 : vector<4x1xf32> to vector<4x128xf32>
      %124 = vector.broadcast %122 : vector<1x128xf32> to vector<4x128xf32>
      %125 = arith.mulf %123, %124 : vector<4x128xf32>
      %126 = arith.addf %116, %125 : vector<4x128xf32>
      %127 = vector.extract_strided_slice %38 {offsets = [0, 1], sizes = [2, 128], strides = [1, 1]} : vector<2x132xf32> to vector<2x128xf32>
      %128 = vector.extract_strided_slice %40 {offsets = [0, 0, 1], sizes = [4, 1, 1], strides = [1, 1, 1]} : vector<4x2x5xf32> to vector<4x1x1xf32>
      %129 = vector.shape_cast %128 : vector<4x1x1xf32> to vector<4xf32>
      %130 = vector.shape_cast %129 : vector<4xf32> to vector<4x1xf32>
      %131 = vector.extract_strided_slice %127 {offsets = [0, 0], sizes = [1, 128], strides = [1, 1]} : vector<2x128xf32> to vector<1x128xf32>
      %132 = vector.shape_cast %131 : vector<1x128xf32> to vector<128xf32>
      %133 = vector.shape_cast %132 : vector<128xf32> to vector<1x128xf32>
      %134 = vector.broadcast %130 : vector<4x1xf32> to vector<4x128xf32>
      %135 = vector.broadcast %133 : vector<1x128xf32> to vector<4x128xf32>
      %136 = arith.mulf %134, %135 : vector<4x128xf32>
      %137 = arith.addf %126, %136 : vector<4x128xf32>
      %138 = vector.extract_strided_slice %40 {offsets = [0, 1, 1], sizes = [4, 1, 1], strides = [1, 1, 1]} : vector<4x2x5xf32> to vector<4x1x1xf32>
      %139 = vector.shape_cast %138 : vector<4x1x1xf32> to vector<4xf32>
      %140 = vector.shape_cast %139 : vector<4xf32> to vector<4x1xf32>
      %141 = vector.extract_strided_slice %127 {offsets = [1, 0], sizes = [1, 128], strides = [1, 1]} : vector<2x128xf32> to vector<1x128xf32>
      %142 = vector.shape_cast %141 : vector<1x128xf32> to vector<128xf32>
      %143 = vector.shape_cast %142 : vector<128xf32> to vector<1x128xf32>
      %144 = vector.broadcast %140 : vector<4x1xf32> to vector<4x128xf32>
      %145 = vector.broadcast %143 : vector<1x128xf32> to vector<4x128xf32>
      %146 = arith.mulf %144, %145 : vector<4x128xf32>
      %147 = arith.addf %137, %146 : vector<4x128xf32>
      %148 = vector.extract_strided_slice %37 {offsets = [0, 2], sizes = [3, 128], strides = [1, 1]} : vector<3x132xf32> to vector<3x128xf32>
      %149 = vector.extract_strided_slice %39 {offsets = [0, 0, 2], sizes = [4, 1, 1], strides = [1, 1, 1]} : vector<4x3x5xf32> to vector<4x1x1xf32>
      %150 = vector.shape_cast %149 : vector<4x1x1xf32> to vector<4xf32>
      %151 = vector.shape_cast %150 : vector<4xf32> to vector<4x1xf32>
      %152 = vector.extract_strided_slice %148 {offsets = [0, 0], sizes = [1, 128], strides = [1, 1]} : vector<3x128xf32> to vector<1x128xf32>
      %153 = vector.shape_cast %152 : vector<1x128xf32> to vector<128xf32>
      %154 = vector.shape_cast %153 : vector<128xf32> to vector<1x128xf32>
      %155 = vector.broadcast %151 : vector<4x1xf32> to vector<4x128xf32>
      %156 = vector.broadcast %154 : vector<1x128xf32> to vector<4x128xf32>
      %157 = arith.mulf %155, %156 : vector<4x128xf32>
      %158 = arith.addf %147, %157 : vector<4x128xf32>
      %159 = vector.extract_strided_slice %39 {offsets = [0, 1, 2], sizes = [4, 1, 1], strides = [1, 1, 1]} : vector<4x3x5xf32> to vector<4x1x1xf32>
      %160 = vector.shape_cast %159 : vector<4x1x1xf32> to vector<4xf32>
      %161 = vector.shape_cast %160 : vector<4xf32> to vector<4x1xf32>
      %162 = vector.extract_strided_slice %148 {offsets = [1, 0], sizes = [1, 128], strides = [1, 1]} : vector<3x128xf32> to vector<1x128xf32>
      %163 = vector.shape_cast %162 : vector<1x128xf32> to vector<128xf32>
      %164 = vector.shape_cast %163 : vector<128xf32> to vector<1x128xf32>
      %165 = vector.broadcast %161 : vector<4x1xf32> to vector<4x128xf32>
      %166 = vector.broadcast %164 : vector<1x128xf32> to vector<4x128xf32>
      %167 = arith.mulf %165, %166 : vector<4x128xf32>
      %168 = arith.addf %158, %167 : vector<4x128xf32>
      %169 = vector.extract_strided_slice %39 {offsets = [0, 2, 2], sizes = [4, 1, 1], strides = [1, 1, 1]} : vector<4x3x5xf32> to vector<4x1x1xf32>
      %170 = vector.shape_cast %169 : vector<4x1x1xf32> to vector<4xf32>
      %171 = vector.shape_cast %170 : vector<4xf32> to vector<4x1xf32>
      %172 = vector.extract_strided_slice %148 {offsets = [2, 0], sizes = [1, 128], strides = [1, 1]} : vector<3x128xf32> to vector<1x128xf32>
      %173 = vector.shape_cast %172 : vector<1x128xf32> to vector<128xf32>
      %174 = vector.shape_cast %173 : vector<128xf32> to vector<1x128xf32>
      %175 = vector.broadcast %171 : vector<4x1xf32> to vector<4x128xf32>
      %176 = vector.broadcast %174 : vector<1x128xf32> to vector<4x128xf32>
      %177 = arith.mulf %175, %176 : vector<4x128xf32>
      %178 = arith.addf %168, %177 : vector<4x128xf32>
      %179 = vector.extract_strided_slice %38 {offsets = [0, 2], sizes = [2, 128], strides = [1, 1]} : vector<2x132xf32> to vector<2x128xf32>
      %180 = vector.extract_strided_slice %40 {offsets = [0, 0, 2], sizes = [4, 1, 1], strides = [1, 1, 1]} : vector<4x2x5xf32> to vector<4x1x1xf32>
      %181 = vector.shape_cast %180 : vector<4x1x1xf32> to vector<4xf32>
      %182 = vector.shape_cast %181 : vector<4xf32> to vector<4x1xf32>
      %183 = vector.extract_strided_slice %179 {offsets = [0, 0], sizes = [1, 128], strides = [1, 1]} : vector<2x128xf32> to vector<1x128xf32>
      %184 = vector.shape_cast %183 : vector<1x128xf32> to vector<128xf32>
      %185 = vector.shape_cast %184 : vector<128xf32> to vector<1x128xf32>
      %186 = vector.broadcast %182 : vector<4x1xf32> to vector<4x128xf32>
      %187 = vector.broadcast %185 : vector<1x128xf32> to vector<4x128xf32>
      %188 = arith.mulf %186, %187 : vector<4x128xf32>
      %189 = arith.addf %178, %188 : vector<4x128xf32>
      %190 = vector.extract_strided_slice %40 {offsets = [0, 1, 2], sizes = [4, 1, 1], strides = [1, 1, 1]} : vector<4x2x5xf32> to vector<4x1x1xf32>
      %191 = vector.shape_cast %190 : vector<4x1x1xf32> to vector<4xf32>
      %192 = vector.shape_cast %191 : vector<4xf32> to vector<4x1xf32>
      %193 = vector.extract_strided_slice %179 {offsets = [1, 0], sizes = [1, 128], strides = [1, 1]} : vector<2x128xf32> to vector<1x128xf32>
      %194 = vector.shape_cast %193 : vector<1x128xf32> to vector<128xf32>
      %195 = vector.shape_cast %194 : vector<128xf32> to vector<1x128xf32>
      %196 = vector.broadcast %192 : vector<4x1xf32> to vector<4x128xf32>
      %197 = vector.broadcast %195 : vector<1x128xf32> to vector<4x128xf32>
      %198 = arith.mulf %196, %197 : vector<4x128xf32>
      %199 = arith.addf %189, %198 : vector<4x128xf32>
      %200 = vector.extract_strided_slice %37 {offsets = [0, 3], sizes = [3, 128], strides = [1, 1]} : vector<3x132xf32> to vector<3x128xf32>
      %201 = vector.extract_strided_slice %39 {offsets = [0, 0, 3], sizes = [4, 1, 1], strides = [1, 1, 1]} : vector<4x3x5xf32> to vector<4x1x1xf32>
      %202 = vector.shape_cast %201 : vector<4x1x1xf32> to vector<4xf32>
      %203 = vector.shape_cast %202 : vector<4xf32> to vector<4x1xf32>
      %204 = vector.extract_strided_slice %200 {offsets = [0, 0], sizes = [1, 128], strides = [1, 1]} : vector<3x128xf32> to vector<1x128xf32>
      %205 = vector.shape_cast %204 : vector<1x128xf32> to vector<128xf32>
      %206 = vector.shape_cast %205 : vector<128xf32> to vector<1x128xf32>
      %207 = vector.broadcast %203 : vector<4x1xf32> to vector<4x128xf32>
      %208 = vector.broadcast %206 : vector<1x128xf32> to vector<4x128xf32>
      %209 = arith.mulf %207, %208 : vector<4x128xf32>
      %210 = arith.addf %199, %209 : vector<4x128xf32>
      %211 = vector.extract_strided_slice %39 {offsets = [0, 1, 3], sizes = [4, 1, 1], strides = [1, 1, 1]} : vector<4x3x5xf32> to vector<4x1x1xf32>
      %212 = vector.shape_cast %211 : vector<4x1x1xf32> to vector<4xf32>
      %213 = vector.shape_cast %212 : vector<4xf32> to vector<4x1xf32>
      %214 = vector.extract_strided_slice %200 {offsets = [1, 0], sizes = [1, 128], strides = [1, 1]} : vector<3x128xf32> to vector<1x128xf32>
      %215 = vector.shape_cast %214 : vector<1x128xf32> to vector<128xf32>
      %216 = vector.shape_cast %215 : vector<128xf32> to vector<1x128xf32>
      %217 = vector.broadcast %213 : vector<4x1xf32> to vector<4x128xf32>
      %218 = vector.broadcast %216 : vector<1x128xf32> to vector<4x128xf32>
      %219 = arith.mulf %217, %218 : vector<4x128xf32>
      %220 = arith.addf %210, %219 : vector<4x128xf32>
      %221 = vector.extract_strided_slice %39 {offsets = [0, 2, 3], sizes = [4, 1, 1], strides = [1, 1, 1]} : vector<4x3x5xf32> to vector<4x1x1xf32>
      %222 = vector.shape_cast %221 : vector<4x1x1xf32> to vector<4xf32>
      %223 = vector.shape_cast %222 : vector<4xf32> to vector<4x1xf32>
      %224 = vector.extract_strided_slice %200 {offsets = [2, 0], sizes = [1, 128], strides = [1, 1]} : vector<3x128xf32> to vector<1x128xf32>
      %225 = vector.shape_cast %224 : vector<1x128xf32> to vector<128xf32>
      %226 = vector.shape_cast %225 : vector<128xf32> to vector<1x128xf32>
      %227 = vector.broadcast %223 : vector<4x1xf32> to vector<4x128xf32>
      %228 = vector.broadcast %226 : vector<1x128xf32> to vector<4x128xf32>
      %229 = arith.mulf %227, %228 : vector<4x128xf32>
      %230 = arith.addf %220, %229 : vector<4x128xf32>
      %231 = vector.extract_strided_slice %38 {offsets = [0, 3], sizes = [2, 128], strides = [1, 1]} : vector<2x132xf32> to vector<2x128xf32>
      %232 = vector.extract_strided_slice %40 {offsets = [0, 0, 3], sizes = [4, 1, 1], strides = [1, 1, 1]} : vector<4x2x5xf32> to vector<4x1x1xf32>
      %233 = vector.shape_cast %232 : vector<4x1x1xf32> to vector<4xf32>
      %234 = vector.shape_cast %233 : vector<4xf32> to vector<4x1xf32>
      %235 = vector.extract_strided_slice %231 {offsets = [0, 0], sizes = [1, 128], strides = [1, 1]} : vector<2x128xf32> to vector<1x128xf32>
      %236 = vector.shape_cast %235 : vector<1x128xf32> to vector<128xf32>
      %237 = vector.shape_cast %236 : vector<128xf32> to vector<1x128xf32>
      %238 = vector.broadcast %234 : vector<4x1xf32> to vector<4x128xf32>
      %239 = vector.broadcast %237 : vector<1x128xf32> to vector<4x128xf32>
      %240 = arith.mulf %238, %239 : vector<4x128xf32>
      %241 = arith.addf %230, %240 : vector<4x128xf32>
      %242 = vector.extract_strided_slice %40 {offsets = [0, 1, 3], sizes = [4, 1, 1], strides = [1, 1, 1]} : vector<4x2x5xf32> to vector<4x1x1xf32>
      %243 = vector.shape_cast %242 : vector<4x1x1xf32> to vector<4xf32>
      %244 = vector.shape_cast %243 : vector<4xf32> to vector<4x1xf32>
      %245 = vector.extract_strided_slice %231 {offsets = [1, 0], sizes = [1, 128], strides = [1, 1]} : vector<2x128xf32> to vector<1x128xf32>
      %246 = vector.shape_cast %245 : vector<1x128xf32> to vector<128xf32>
      %247 = vector.shape_cast %246 : vector<128xf32> to vector<1x128xf32>
      %248 = vector.broadcast %244 : vector<4x1xf32> to vector<4x128xf32>
      %249 = vector.broadcast %247 : vector<1x128xf32> to vector<4x128xf32>
      %250 = arith.mulf %248, %249 : vector<4x128xf32>
      %251 = arith.addf %241, %250 : vector<4x128xf32>
      %252 = vector.extract_strided_slice %37 {offsets = [0, 4], sizes = [3, 128], strides = [1, 1]} : vector<3x132xf32> to vector<3x128xf32>
      %253 = vector.extract_strided_slice %39 {offsets = [0, 0, 4], sizes = [4, 1, 1], strides = [1, 1, 1]} : vector<4x3x5xf32> to vector<4x1x1xf32>
      %254 = vector.shape_cast %253 : vector<4x1x1xf32> to vector<4xf32>
      %255 = vector.shape_cast %254 : vector<4xf32> to vector<4x1xf32>
      %256 = vector.extract_strided_slice %252 {offsets = [0, 0], sizes = [1, 128], strides = [1, 1]} : vector<3x128xf32> to vector<1x128xf32>
      %257 = vector.shape_cast %256 : vector<1x128xf32> to vector<128xf32>
      %258 = vector.shape_cast %257 : vector<128xf32> to vector<1x128xf32>
      %259 = vector.broadcast %255 : vector<4x1xf32> to vector<4x128xf32>
      %260 = vector.broadcast %258 : vector<1x128xf32> to vector<4x128xf32>
      %261 = arith.mulf %259, %260 : vector<4x128xf32>
      %262 = arith.addf %251, %261 : vector<4x128xf32>
      %263 = vector.extract_strided_slice %39 {offsets = [0, 1, 4], sizes = [4, 1, 1], strides = [1, 1, 1]} : vector<4x3x5xf32> to vector<4x1x1xf32>
      %264 = vector.shape_cast %263 : vector<4x1x1xf32> to vector<4xf32>
      %265 = vector.shape_cast %264 : vector<4xf32> to vector<4x1xf32>
      %266 = vector.extract_strided_slice %252 {offsets = [1, 0], sizes = [1, 128], strides = [1, 1]} : vector<3x128xf32> to vector<1x128xf32>
      %267 = vector.shape_cast %266 : vector<1x128xf32> to vector<128xf32>
      %268 = vector.shape_cast %267 : vector<128xf32> to vector<1x128xf32>
      %269 = vector.broadcast %265 : vector<4x1xf32> to vector<4x128xf32>
      %270 = vector.broadcast %268 : vector<1x128xf32> to vector<4x128xf32>
      %271 = arith.mulf %269, %270 : vector<4x128xf32>
      %272 = arith.addf %262, %271 : vector<4x128xf32>
      %273 = vector.extract_strided_slice %39 {offsets = [0, 2, 4], sizes = [4, 1, 1], strides = [1, 1, 1]} : vector<4x3x5xf32> to vector<4x1x1xf32>
      %274 = vector.shape_cast %273 : vector<4x1x1xf32> to vector<4xf32>
      %275 = vector.shape_cast %274 : vector<4xf32> to vector<4x1xf32>
      %276 = vector.extract_strided_slice %252 {offsets = [2, 0], sizes = [1, 128], strides = [1, 1]} : vector<3x128xf32> to vector<1x128xf32>
      %277 = vector.shape_cast %276 : vector<1x128xf32> to vector<128xf32>
      %278 = vector.shape_cast %277 : vector<128xf32> to vector<1x128xf32>
      %279 = vector.broadcast %275 : vector<4x1xf32> to vector<4x128xf32>
      %280 = vector.broadcast %278 : vector<1x128xf32> to vector<4x128xf32>
      %281 = arith.mulf %279, %280 : vector<4x128xf32>
      %282 = arith.addf %272, %281 : vector<4x128xf32>
      %283 = vector.extract_strided_slice %38 {offsets = [0, 4], sizes = [2, 128], strides = [1, 1]} : vector<2x132xf32> to vector<2x128xf32>
      %284 = vector.extract_strided_slice %40 {offsets = [0, 0, 4], sizes = [4, 1, 1], strides = [1, 1, 1]} : vector<4x2x5xf32> to vector<4x1x1xf32>
      %285 = vector.shape_cast %284 : vector<4x1x1xf32> to vector<4xf32>
      %286 = vector.shape_cast %285 : vector<4xf32> to vector<4x1xf32>
      %287 = vector.extract_strided_slice %283 {offsets = [0, 0], sizes = [1, 128], strides = [1, 1]} : vector<2x128xf32> to vector<1x128xf32>
      %288 = vector.shape_cast %287 : vector<1x128xf32> to vector<128xf32>
      %289 = vector.shape_cast %288 : vector<128xf32> to vector<1x128xf32>
      %290 = vector.broadcast %286 : vector<4x1xf32> to vector<4x128xf32>
      %291 = vector.broadcast %289 : vector<1x128xf32> to vector<4x128xf32>
      %292 = arith.mulf %290, %291 : vector<4x128xf32>
      %293 = arith.addf %282, %292 : vector<4x128xf32>
      %294 = vector.extract_strided_slice %40 {offsets = [0, 1, 4], sizes = [4, 1, 1], strides = [1, 1, 1]} : vector<4x2x5xf32> to vector<4x1x1xf32>
      %295 = vector.shape_cast %294 : vector<4x1x1xf32> to vector<4xf32>
      %296 = vector.shape_cast %295 : vector<4xf32> to vector<4x1xf32>
      %297 = vector.extract_strided_slice %283 {offsets = [1, 0], sizes = [1, 128], strides = [1, 1]} : vector<2x128xf32> to vector<1x128xf32>
      %298 = vector.shape_cast %297 : vector<1x128xf32> to vector<128xf32>
      %299 = vector.shape_cast %298 : vector<128xf32> to vector<1x128xf32>
      %300 = vector.broadcast %296 : vector<4x1xf32> to vector<4x128xf32>
      %301 = vector.broadcast %299 : vector<1x128xf32> to vector<4x128xf32>
      %302 = arith.mulf %300, %301 : vector<4x128xf32>
      %303 = arith.addf %293, %302 : vector<4x128xf32>
      %304 = math.tanh %303 : vector<4x128xf32>
      %c0_36 = arith.constant 0 : index
      %c0_37 = arith.constant 0 : index
      %c0_38 = arith.constant 0 : index
      %305 = vector.load %arg7[%c0_36, %c0_37, %c0_38] : memref<1x4x128xf32, #tpu.memory_space<vmem>>, vector<1x4x128xf32>
      %306 = vector.shape_cast %305 : vector<1x4x128xf32> to vector<4x128xf32>
      %307 = vector.shape_cast %304 : vector<4x128xf32> to vector<1x4x128xf32>
      tpu.vector_store %arg7[%c0_36, %c0_37, %c0_38], %307 {strides = array<i32>} : memref<1x4x128xf32, #tpu.memory_space<vmem>>, vector<1x4x128xf32>,
    } else {
    }
    %c0_10 = arith.constant 0 : index
    %c128 = arith.constant 128 : index
    %25 = vector.load %arg8[%c0_10, %c128] : memref<3x132xf32, #tpu.memory_space<vmem>>, vector<3x2xf32>
    %c0_11 = arith.constant 0 : index
    %c128_12 = arith.constant 128 : index
    %26 = vector.load %arg9[%c0_11, %c128_12] : memref<2x132xf32, #tpu.memory_space<vmem>>, vector<2x2xf32>
    %c0_i32_13 = arith.constant 0 : i32
    %27 = arith.cmpi sgt, %arg1, %c0_i32_13 : i32
    %cst_14 = arith.constant 0.000000e+00 : f32
    %28 = vector.broadcast %cst_14 : f32 to vector<3x2xf32>
    %29 = arith.select %27, %25, %28 : vector<3x2xf32>
    %c0_15 = arith.constant 0 : index
    %c0_16 = arith.constant 0 : index
    %30 = vector.load %arg8[%c0_15, %c0_16] : memref<3x132xf32, #tpu.memory_space<vmem>>, vector<3x2xf32>
    tpu.vector_store %arg8[%c0_15, %c0_16], %29 {strides = array<i32>} : memref<3x132xf32, #tpu.memory_space<vmem>>, vector<3x2xf32>,
    %c0_i32_17 = arith.constant 0 : i32
    %31 = arith.cmpi sgt, %arg1, %c0_i32_17 : i32
    %cst_18 = arith.constant 0.000000e+00 : f32
    %32 = vector.broadcast %cst_18 : f32 to vector<2x2xf32>
    %33 = arith.select %31, %26, %32 : vector<2x2xf32>
    %c0_19 = arith.constant 0 : index
    %c0_20 = arith.constant 0 : index
    %34 = vector.load %arg9[%c0_19, %c0_20] : memref<2x132xf32, #tpu.memory_space<vmem>>, vector<2x2xf32>
    tpu.vector_store %arg9[%c0_19, %c0_20], %33 {strides = array<i32>} : memref<2x132xf32, #tpu.memory_space<vmem>>, vector<2x2xf32>,
    %c0_21 = arith.constant 0 : index
    %c2 = arith.constant 2 : index
    %35 = vector.load %arg8[%c0_21, %c2] : memref<3x132xf32, #tpu.memory_space<vmem>>, vector<3x128xf32>
    tpu.vector_store %arg8[%c0_21, %c2], %11 {strides = array<i32>} : memref<3x132xf32, #tpu.memory_space<vmem>>, vector<3x128xf32>,
    %c0_22 = arith.constant 0 : index
    %c2_23 = arith.constant 2 : index
    %36 = vector.load %arg9[%c0_22, %c2_23] : memref<2x132xf32, #tpu.memory_space<vmem>>, vector<2x128xf32>
    tpu.vector_store %arg9[%c0_22, %c2_23], %17 {strides = array<i32>} : memref<2x132xf32, #tpu.memory_space<vmem>>, vector<2x128xf32>,
    return
  }
  func.func @transform_0(%arg0: i32, %arg1: i32) -> (i32, i32, i32) {
    %c3_i32 = arith.constant 3 : i32
    %0 = arith.minsi %arg1, %c3_i32 : i32
    %c0_i32 = arith.constant 0 : i32
    %c0_i32_0 = arith.constant 0 : i32
    return %arg0, %c0_i32, %0 : i32, i32, i32
  }
  func.func @transform_1(%arg0: i32, %arg1: i32) -> (i32, i32, i32) {
    %c3_i32 = arith.constant 3 : i32
    %0 = arith.minsi %arg1, %c3_i32 : i32
    %c0_i32 = arith.constant 0 : i32
    %c0_i32_0 = arith.constant 0 : i32
    return %arg0, %c0_i32, %0 : i32, i32, i32
  }
  func.func @transform_2(%arg0: i32, %arg1: i32) -> (i32, i32, i32) {
    %c0_i32 = arith.constant 0 : i32
    %c0_i32_0 = arith.constant 0 : i32
    %c0_i32_1 = arith.constant 0 : i32
    %c0_i32_2 = arith.constant 0 : i32
    return %c0_i32, %c0_i32_0, %c0_i32_1 : i32, i32, i32
  }
  func.func @transform_3(%arg0: i32, %arg1: i32) -> (i32, i32, i32) {
    %c0_i32 = arith.constant 0 : i32
    %c0_i32_0 = arith.constant 0 : i32
    %c0_i32_1 = arith.constant 0 : i32
    %c0_i32_2 = arith.constant 0 : i32
    return %c0_i32, %c0_i32_0, %c0_i32_1 : i32, i32, i32
  }
  func.func @transform_4(%arg0: i32, %arg1: i32) -> (i32, i32) {
    %c0_i32 = arith.constant 0 : i32
    %c0_i32_0 = arith.constant 0 : i32
    %c0_i32_1 = arith.constant 0 : i32
    return %c0_i32, %c0_i32_0 : i32, i32
  }
  func.func @transform_5(%arg0: i32, %arg1: i32) -> (i32, i32, i32) {
    %c1_i32 = arith.constant 1 : i32
    %0 = arith.subi %arg1, %c1_i32 : i32
    %c0_i32 = arith.constant 0 : i32
    %1 = arith.maxsi %0, %c0_i32 : i32
    %c0_i32_0 = arith.constant 0 : i32
    %c0_i32_1 = arith.constant 0 : i32
    return %arg0, %c0_i32_0, %1 : i32, i32, i32
  }
}

</mosaic_0001>

<llo_original>
// kernel: tpu_custom_call.1
$region0: #{tpu_custom_call.1}
  #allocation0 [shape = 'u32[]', space=smem, size = 0x4, offset = 0x4, fixed_abs, tag = 'smem constant byte address 0x4 - core index']
  #allocation1 [shape = 'u32[144,128]{1,0:T(1,128)}', space=vmem, size = 0x12000, scoped, tag = 'internal scratch']
  #allocation2 [shape = 'f32[3,132]{1,0:T(4,128)}', space=vmem, size = 0x1000, scoped, tag = 'scratch operand']
  #allocation3 [shape = 'f32[2,132]{1,0:T(2,128)}', space=vmem, size = 0x800, scoped, tag = 'scratch operand']
  %s0 = inlined_call_operand.vmem [shape: f32[2,3,512], index: 0, kind: input, shape index: {}]
  %s1 = inlined_call_operand.vmem [shape: f32[2,2,512], index: 1, kind: input, shape index: {}]
  %s2 = inlined_call_operand.vmem [shape: f32[4,3,5], index: 2, kind: input, shape index: {}]
  %s3 = inlined_call_operand.vmem [shape: f32[4,2,5], index: 3, kind: input, shape index: {}]
  %s4 = inlined_call_operand.vmem [shape: f32[4,1], index: 4, kind: input, shape index: {}]
  %s5 = inlined_call_operand.hbm [shape: f32[2,4,512], index: 5, kind: output, shape index: {}]
  %s6 = sld [smem:[#allocation0]]
  $region57: #{tpu_custom_call.1} parent=0
    _
  %s8 = ssub.s32 1, %s6
  %s9 = scalar_select 0, %s8, %s6
  $region1: #{tpu_custom_call.1} parent=0
    #allocation4 [shape = 'u8[4096]{0}', space=vmem, size = 0x1000, scoped, tag = 'output window, operand 0']
    #allocation5 [shape = 's32[2]{0}', space=sflag, size = 0x8, scoped, tag = 'scoped memory for tpu_custom_call.1']
    %10 = vsyncpa [#allocation5], 0
    %s11 = scalar_lea.sflag [#allocation5], 1
    %12 = vsyncpa %s11, 0
    loop: start=0, step=1, limit=12
    $region2: #{tpu_custom_call.1} parent=1 // loop_pre_header
      _
    $region3: #{tpu_custom_call.1} parent=1 // loop_header
      %s14 = sphi 0, %s18
      %p15 = scmp.ge.s32.totalorder %s14, 12
      %s21 = sphi 0, %s33
      %s22 = sphi 0, %s29
      %s23 = sphi 0, %s21
      %s24 = sphi 0, %s22
      %s25 = sphi 0, %s23
      %s26 = sphi 0, %s24
      %s42 = sphi 0, %s44
      %s45 = sphi 0, %s42
      %s46 = sphi 0, %s45
      %s62 = sphi 0, %s46
      %s74 = sphi 0, %s76
      %s77 = sphi 0, %s74
      %s78 = sphi 0, %s77
      %s94 = sphi 0, %s78
      %s98 = sphi 0, %s98
      %s100 = sphi 0, %s98
      %s101 = sphi 0, %s100
      %s115 = sphi 0, %s101
      %s119 = sphi 0, %s119
      %s121 = sphi 0, %s119
      %s122 = sphi 0, %s121
      %s136 = sphi 0, %s122
      %s140 = sphi 0, %s140
      %s142 = sphi 0, %s140
      %s143 = sphi 0, %s142
      %s157 = sphi 0, %s143
      %s171 = sphi 0, %s173
      %s174 = sphi 0, %s171
      %s175 = sphi 0, %s174
      %s191 = sphi 0, %s175
    $region4: #{tpu_custom_call.1} parent=1 // loop_header_branch
      %17 = sbr.rel (%p15) target = $region8
    $region5: #{tpu_custom_call.1} parent=1 // loop_body
      %s19 = ssub.s32 %s14, 1
      %s20 = ssub.s32 %s14, 2
      %s27 = sadd.s32 1, %s22
      %p28 = scmp.ge.s32.totalorder %s27, 5
      %s29 = scalar_select %p28, 0, %s27
      %s30 = sadd.s32 1, %s21
      %s31 = scalar_select %p28, %s30, %s21
      %p32 = scmp.ge.s32.totalorder %s31, 2
      %s33 = scalar_select %p32, 0, %s31
      %p34 = scmp.lt.s32.totalorder %s22, 3
      %s35 = scalar_select %p34, %s22, 3
      %p36 = scmp.lt.s32.totalorder %s29, 3
      %s37 = scalar_select %p36, %s29, 3
      %s38 = ssub.s32 %s21, %s33
      %s39 = ssub.s32 %s35, %s37
      %s40 = sor.u32 %s38, %s39
      %p41 = scmp.eq.s32.totalorder %s40, 0
      %s43 = sadd.s32 %s42, 1
      %s44 = scalar_select %p41, %s42, %s43
      %p47 = pneg %p41
      %p48 = scmp.eq.s32.totalorder %s14, 9
      %p49 = por %p47, %p48
      %p50 = scmp.ne.s32.totalorder %s42, %s45
      %p51 = scmp.eq.s32.totalorder %s14, 0
      %p52 = por %p50, %p51
      %p53 = scmp.ne.s32.totalorder %s42, %s45
      %p54 = scmp.eq.s32.totalorder %s19, 9
      %p55 = por %p53, %p54
      %p56 = scmp.ne.s32.totalorder %s45, %s46
      %p57 = scmp.eq.s32.totalorder %s19, 0
      %p58 = por %p56, %p57
      %p59 = scmp.ne.s32.totalorder %s45, %s46
      %p60 = scmp.eq.s32.totalorder %s20, 9
      %p61 = por %p59, %p60
      %p63 = scmp.ne.s32.totalorder %s46, %s62
      %p64 = scmp.eq.s32.totalorder %s20, 0
      %p65 = por %p63, %p64
      %p66 = scmp.lt.s32.totalorder %s22, 3
      %s67 = scalar_select %p66, %s22, 3
      %p68 = scmp.lt.s32.totalorder %s29, 3
      %s69 = scalar_select %p68, %s29, 3
      %s70 = ssub.s32 %s21, %s33
      %s71 = ssub.s32 %s67, %s69
      %s72 = sor.u32 %s70, %s71
      %p73 = scmp.eq.s32.totalorder %s72, 0
      %s75 = sadd.s32 %s74, 1
      %s76 = scalar_select %p73, %s74, %s75
      %p79 = pneg %p73
      %p80 = scmp.eq.s32.totalorder %s14, 9
      %p81 = por %p79, %p80
      %p82 = scmp.ne.s32.totalorder %s74, %s77
      %p83 = scmp.eq.s32.totalorder %s14, 0
      %p84 = por %p82, %p83
      %p85 = scmp.ne.s32.totalorder %s74, %s77
      %p86 = scmp.eq.s32.totalorder %s19, 9
      %p87 = por %p85, %p86
      %p88 = scmp.ne.s32.totalorder %s77, %s78
      %p89 = scmp.eq.s32.totalorder %s19, 0
      %p90 = por %p88, %p89
      %p91 = scmp.ne.s32.totalorder %s77, %s78
      %p92 = scmp.eq.s32.totalorder %s20, 9
      %p93 = por %p91, %p92
      %p95 = scmp.ne.s32.totalorder %s78, %s94
      %p96 = scmp.eq.s32.totalorder %s20, 0
      %p97 = por %p95, %p96
      %s99 = sadd.s32 %s98, 1
      %p102 = scmp.eq.s32.totalorder %s14, 9
      %p103 = scmp.ne.s32.totalorder %s98, %s100
      %p104 = scmp.eq.s32.totalorder %s14, 0
      %p105 = por %p103, %p104
      %p106 = scmp.ne.s32.totalorder %s98, %s100
      %p107 = scmp.eq.s32.totalorder %s19, 9
      %p108 = por %p106, %p107
      %p109 = scmp.ne.s32.totalorder %s100, %s101
      %p110 = scmp.eq.s32.totalorder %s19, 0
      %p111 = por %p109, %p110
      %p112 = scmp.ne.s32.totalorder %s100, %s101
      %p113 = scmp.eq.s32.totalorder %s20, 9
      %p114 = por %p112, %p113
      %p116 = scmp.ne.s32.totalorder %s101, %s115
      %p117 = scmp.eq.s32.totalorder %s20, 0
      %p118 = por %p116, %p117
      %s120 = sadd.s32 %s119, 1
      %p123 = scmp.eq.s32.totalorder %s14, 9
      %p124 = scmp.ne.s32.totalorder %s119, %s121
      %p125 = scmp.eq.s32.totalorder %s14, 0
      %p126 = por %p124, %p125
      %p127 = scmp.ne.s32.totalorder %s119, %s121
      %p128 = scmp.eq.s32.totalorder %s19, 9
      %p129 = por %p127, %p128
      %p130 = scmp.ne.s32.totalorder %s121, %s122
      %p131 = scmp.eq.s32.totalorder %s19, 0
      %p132 = por %p130, %p131
      %p133 = scmp.ne.s32.totalorder %s121, %s122
      %p134 = scmp.eq.s32.totalorder %s20, 9
      %p135 = por %p133, %p134
      %p137 = scmp.ne.s32.totalorder %s122, %s136
      %p138 = scmp.eq.s32.totalorder %s20, 0
      %p139 = por %p137, %p138
      %s141 = sadd.s32 %s140, 1
      %p144 = scmp.eq.s32.totalorder %s14, 9
      %p145 = scmp.ne.s32.totalorder %s140, %s142
      %p146 = scmp.eq.s32.totalorder %s14, 0
      %p147 = por %p145, %p146
      %p148 = scmp.ne.s32.totalorder %s140, %s142
      %p149 = scmp.eq.s32.totalorder %s19, 9
      %p150 = por %p148, %p149
      %p151 = scmp.ne.s32.totalorder %s142, %s143
      %p152 = scmp.eq.s32.totalorder %s19, 0
      %p153 = por %p151, %p152
      %p154 = scmp.ne.s32.totalorder %s142, %s143
      %p155 = scmp.eq.s32.totalorder %s20, 9
      %p156 = por %p154, %p155
      %p158 = scmp.ne.s32.totalorder %s143, %s157
      %p159 = scmp.eq.s32.totalorder %s20, 0
      %p160 = por %p158, %p159
      %s161 = ssub.s32 %s22, 1
      %p162 = scmp.gt.s32.totalorder %s161, 0
      %s163 = scalar_select %p162, %s161, 0
      %s164 = ssub.s32 %s29, 1
      %p165 = scmp.gt.s32.totalorder %s164, 0
      %s166 = scalar_select %p165, %s164, 0
      %s167 = ssub.s32 %s21, %s33
      %s168 = ssub.s32 %s163, %s166
      %s169 = sor.u32 %s167, %s168
      %p170 = scmp.eq.s32.totalorder %s169, 0
      %s172 = sadd.s32 %s171, 1
      %s173 = scalar_select %p170, %s171, %s172
      %p176 = pneg %p170
      %p177 = scmp.eq.s32.totalorder %s14, 9
      %p178 = por %p176, %p177
      %p179 = scmp.ne.s32.totalorder %s171, %s174
      %p180 = scmp.eq.s32.totalorder %s14, 0
      %p181 = por %p179, %p180
      %p182 = scmp.ne.s32.totalorder %s171, %s174
      %p183 = scmp.eq.s32.totalorder %s19, 9
      %p184 = por %p182, %p183
      %p185 = scmp.ne.s32.totalorder %s174, %s175
      %p186 = scmp.eq.s32.totalorder %s19, 0
      %p187 = por %p185, %p186
      %p188 = scmp.ne.s32.totalorder %s174, %s175
      %p189 = scmp.eq.s32.totalorder %s20, 9
      %p190 = por %p188, %p189
      %p192 = scmp.ne.s32.totalorder %s175, %s191
      %p193 = scmp.eq.s32.totalorder %s20, 0
      %p194 = por %p192, %p193
      %p195 = scmp.le.s32.totalorder 1, %s14
      %p196 = scmp.lt.s32.totalorder %s14, 11
      %p197 = pnand %p195, %p196
      %p198 = pneg %p197
      // Predicated region
      $region9: #{tpu_custom_call.1} parent=5 // pred_check
        _
      $region10: #{tpu_custom_call.1} parent=5 // pred_check_branch
        %200 = sbr.rel (%p197) target = $region12
      $region11: #{tpu_custom_call.1} parent=5 // pred_region
        %s201 = ssub.s32 %s14, 1
        // Predicated region
        $region13: #{tpu_custom_call.1} parent=11 // pred_check
          %p202 = pneg %p111
        $region14: #{tpu_custom_call.1} parent=11 // pred_check_branch
          %204 = sbr.rel (%p202) target = $region16
        $region15: #{tpu_custom_call.1} parent=11 // pred_region
          _
        $region16: #{tpu_custom_call.1} parent=11 // pred_fallthru
          _
        // Predicated region
        $region17: #{tpu_custom_call.1} parent=11 // pred_check
          %p205 = pneg %p132
        $region18: #{tpu_custom_call.1} parent=11 // pred_check_branch
          %207 = sbr.rel (%p205) target = $region20
        $region19: #{tpu_custom_call.1} parent=11 // pred_region
          _
        $region20: #{tpu_custom_call.1} parent=11 // pred_fallthru
          _
        // Predicated region
        $region21: #{tpu_custom_call.1} parent=11 // pred_check
          %p208 = pneg %p153
        $region22: #{tpu_custom_call.1} parent=11 // pred_check_branch
          %210 = sbr.rel (%p208) target = $region24
        $region23: #{tpu_custom_call.1} parent=11 // pred_region
          _
        $region24: #{tpu_custom_call.1} parent=11 // pred_fallthru
          _
      $region12: #{tpu_custom_call.1} parent=5 // pred_fallthru
        _
      %p211 = scmp.lt.s32.totalorder %s14, 10
      // Predicated region
      $region25: #{tpu_custom_call.1} parent=5 // pred_check
        %p212 = pneg %p211
      $region26: #{tpu_custom_call.1} parent=5 // pred_check_branch
        %214 = sbr.rel (%p212) target = $region28
      $region27: #{tpu_custom_call.1} parent=5 // pred_region
        // Predicated region
        $region29: #{tpu_custom_call.1} parent=27 // pred_check
          %p215 = pneg %p52
        $region30: #{tpu_custom_call.1} parent=27 // pred_check_branch
          %217 = sbr.rel (%p215) target = $region32
        $region31: #{tpu_custom_call.1} parent=27 // pred_region
          %p218 = scmp.lt.s32.totalorder %s22, 3
          %s219 = scalar_select %p218, %s22, 3
          %p220 = scmp.lt.s32.totalorder %s21, 1
          %s221 = scalar_select %p220, %s21, 1
          %p222 = scmp.lt.s32.totalorder %s219, 3
          %s223 = scalar_select %p222, %s219, 3
          %s224 = smul.addr %s221, 4
          %s225 = sadd.s32 %s223, %s224
          %s226 = smul.addr %s225, 4
          %s227 = scalar_lea.vmem %s0, %s226
          %p228 = scmp.lt.s32.totalorder %s22, 3
          %s229 = scalar_select %p228, %s22, 3
        $region32: #{tpu_custom_call.1} parent=27 // pred_fallthru
          _
        // Predicated region
        $region33: #{tpu_custom_call.1} parent=27 // pred_check
          %p230 = pneg %p84
        $region34: #{tpu_custom_call.1} parent=27 // pred_check_branch
          %232 = sbr.rel (%p230) target = $region36
        $region35: #{tpu_custom_call.1} parent=27 // pred_region
          %p233 = scmp.lt.s32.totalorder %s22, 3
          %s234 = scalar_select %p233, %s22, 3
          %p235 = scmp.lt.s32.totalorder %s21, 1
          %s236 = scalar_select %p235, %s21, 1
          %p237 = scmp.lt.s32.totalorder %s234, 3
          %s238 = scalar_select %p237, %s234, 3
          %s239 = smul.addr %s236, 4
          %s240 = sadd.s32 %s238, %s239
          %s241 = smul.addr %s240, 2
          %s242 = scalar_lea.vmem %s1, %s241
          %p243 = scmp.lt.s32.totalorder %s22, 3
          %s244 = scalar_select %p243, %s22, 3
        $region36: #{tpu_custom_call.1} parent=27 // pred_fallthru
          _
      $region28: #{tpu_custom_call.1} parent=5 // pred_fallthru
        _
      %p245 = scmp.le.s32.totalorder 1, %s14
      %p246 = scmp.lt.s32.totalorder %s14, 11
      %p247 = pnand %p245, %p246
      %p248 = pneg %p247
      // Predicated region
      $region37: #{tpu_custom_call.1} parent=5 // pred_check
        _
      $region38: #{tpu_custom_call.1} parent=5 // pred_check_branch
        %250 = sbr.rel (%p247) target = $region40
      $region39: #{tpu_custom_call.1} parent=5 // pred_region
        %s251 = ssub.s32 %s14, 1
        %p252 = scmp.lt.s32.totalorder %s24, 3
        %s253 = scalar_select %p252, %s24, 3
        %p254 = scmp.lt.s32.totalorder %s23, 1
        %s255 = scalar_select %p254, %s23, 1
        %p256 = scmp.lt.s32.totalorder %s253, 3
        %s257 = scalar_select %p256, %s253, 3
        %s258 = smul.addr %s255, 4
        %s259 = sadd.s32 %s257, %s258
        %s260 = smul.addr %s259, 4
        %s261 = scalar_lea.vmem %s0, %s260
        %p262 = pneg %p58
        %p263 = pneg %p55
        %p264 = scmp.lt.s32.totalorder %s24, 3
        %s265 = scalar_select %p264, %s24, 3
        %p266 = scmp.lt.s32.totalorder %s23, 1
        %s267 = scalar_select %p266, %s23, 1
        %p268 = scmp.lt.s32.totalorder %s265, 3
        %s269 = scalar_select %p268, %s265, 3
        %s270 = smul.addr %s267, 4
        %s271 = sadd.s32 %s269, %s270
        %s272 = smul.addr %s271, 2
        %s273 = scalar_lea.vmem %s1, %s272
        %p274 = pneg %p90
        %p275 = pneg %p87
        %p276 = pneg %p111
        %p277 = pneg %p108
        %p278 = pneg %p132
        %p279 = pneg %p129
        %p280 = pneg %p153
        %p281 = pneg %p150
        %p282 = pneg %p187
        %p283 = pneg %p184
        %s284 = sand.u32 %s174, 1
        %s285 = scalar_lea.sflag [#allocation5], %s284
        %s286 = sand.u32 %s174, 1
        %s287 = smul.addr %s286, 4
        %s288 = scalar_lea.vmem [#allocation4], %s287
        %p289 = scmp.lt.s32.totalorder %s24, 3
        %s290 = scalar_select %p289, %s24, 3
        %p291 = scmp.lt.s32.totalorder %s23, 1
        %s292 = scalar_select %p291, %s23, 1
        %p293 = scmp.lt.s32.totalorder %s290, 3
        %s294 = scalar_select %p293, %s290, 3
        %s295 = smul.addr %s292, 4
        %s296 = sadd.s32 %s294, %s295
        %s297 = smul.addr %s296, 4
        %s298 = scalar_lea.vmem %s0, %s297
        %p299 = scmp.lt.s32.totalorder %s24, 3
        %s300 = scalar_select %p299, %s24, 3
        %p301 = scmp.lt.s32.totalorder %s24, 3
        %s302 = scalar_select %p301, %s24, 3
        %p303 = scmp.lt.s32.totalorder %s23, 1
        %s304 = scalar_select %p303, %s23, 1
        %p305 = scmp.lt.s32.totalorder %s302, 3
        %s306 = scalar_select %p305, %s302, 3
        %s307 = smul.addr %s304, 4
        %s308 = sadd.s32 %s306, %s307
        %s309 = smul.addr %s308, 2
        %s310 = scalar_lea.vmem %s1, %s309
        %p311 = scmp.lt.s32.totalorder %s24, 3
        %s312 = scalar_select %p311, %s24, 3
        %s313 = ssub.s32 %s24, 1
        %p314 = scmp.gt.s32.totalorder %s313, 0
        %s315 = scalar_select %p314, %s313, 0
        %v316 = vlaneseq
        %v317 = vand.u32 %v316, 127
        %s318 = smul.u32 %s24, 128
        %v319 = vstv %s318
        %v320 = vadd.s32 %v319, %v317
        %vm321 = vcmp.lt.s32.totalorder %v320, 512
        %v322 = vld [vmem:[%s298] sm:$0x7]
        %v323 = vsel %vm321, 1, 0
        %vm324 = vcmp.eq.s32.totalorder %v323, 1
        %v325 = vsel %vm324, %v322, 0.0
        %v326 = vld [vmem:[%s310] sm:$0x3]
        %v327 = vsel %vm324, %v326, 0.0
        %329 = vrot.lane.b32.xlu0 %v325, 2
        %v330 = vpop.permute.xlu0 %329
        %vm332 = vcmask 26640
        %333 = vst.msk [vmem:[#allocation2 + $0x4] sm:$0x7] %vm332, %v330
        %v336 = vunpack.c.l.s4 1983009808
        %v337 = vunpack.c.0.s8 %v336
        %v338 = vlaneseq
        %v339 = vshrl.u32 %v338, 7
        %v340 = vsub.s32 %v337, %v339
        %v341 = vrot.slane %v327, %v340
        %342 = vrot.lane.b32.xlu0 %v341, 2
        %v343 = vpop.permute.xlu0 %342
        %vm345 = vcmask 25616
        %346 = vst.msk [vmem:[#allocation3 + $0x2] sm:$0x3] %vm345, %v343
        %p347 = scmp.gt.s32.totalorder %s24, 0
        // Predicated region
        $region41: #{tpu_custom_call.1} parent=39 // pred_check
          %p348 = pneg %p347
        $region42: #{tpu_custom_call.1} parent=39 // pred_check_branch
          %350 = sbr.rel (%p348) target = $region44
        $region43: #{tpu_custom_call.1} parent=39 // pred_region
          %v351 = vld [vmem:[#allocation2] sm:$0x77]
          %v352 = vld [vmem:[#allocation3] sm:$0xf]
          %v353 = vld [vmem:[%s2] sm:$0x7]
          %v354 = vld [vmem:[%s2 + $0x4] sm:$0x7]
          %v355 = vld [vmem:[%s2 + $0x8] sm:$0x7]
          %v356 = vld [vmem:[%s2 + $0xc] sm:$0x7]
          %v357 = vld [vmem:[%s3] sm:$0x3]
          %v358 = vld [vmem:[%s3 + $0x2] sm:$0x3]
          %v359 = vld [vmem:[%s3 + $0x4] sm:$0x3]
          %v360 = vld [vmem:[%s3 + $0x6] sm:$0x3]
          %v361 = vld [vmem:[%s4] sm:$0xf]
          %363 = vset.pattern.permute.xlu0 0
          %364 = vperm.xlu0 %363, %v361
          %v365 = vpop.permute.xlu0 %364
          %368 = vset.pattern.permute.xlu0 0
          %369 = vperm.xlu0 %368, %v353
          %v370 = vpop.permute.xlu0 %369
          %373 = vset.pattern.permute.xlu0 0
          %374 = vperm.xlu0 %373, %v354
          %v375 = vpop.permute.xlu0 %374
          %378 = vset.pattern.permute.xlu0 0
          %379 = vperm.xlu0 %378, %v355
          %v380 = vpop.permute.xlu0 %379
          %383 = vset.pattern.permute.xlu0 0
          %384 = vperm.xlu0 %383, %v356
          %v385 = vpop.permute.xlu0 %384
          %v387 = vlaneseq
          %v388 = vshrl.u32 %v387, 7
          %v389 = vsub.s32 0, %v388
          %v390 = vrot.slane %v351, %v389
          %v391 = vmul.f32 %v370, %v390
          %v392 = vmul.f32 %v375, %v390
          %v393 = vmul.f32 %v380, %v390
          %v394 = vmul.f32 %v385, %v390
          %v399 = vrot.slane %v392, 7
          %vm400 = vcmask 1041409
          %v401 = vsel %vm400, %v399, %v391
          %v402 = vrot.slane %v393, 6
          %vm403 = vcmask 1042434
          %v404 = vsel %vm403, %v402, %v401
          %v405 = vrot.slane %v394, 5
          %vm406 = vcmask 1043459
          %v407 = vsel %vm406, %v405, %v404
          %v409 = vadd.f32 %v365, %v407
          %v410 = vlaneseq
          %v411 = vshrl.u32 %v410, 7
          %v412 = vsub.s32 1, %v411
          %v413 = vrot.slane %v351, %v412
          %v414 = vmul.f32 %v370, %v413
          %v415 = vmul.f32 %v375, %v413
          %v416 = vmul.f32 %v380, %v413
          %v417 = vmul.f32 %v385, %v413
          %v422 = vrot.slane %v414, 1
          %v423 = vsel %vm400, %v415, %v422
          %v424 = vrot.slane %v416, 7
          %v425 = vsel %vm403, %v424, %v423
          %v426 = vrot.slane %v417, 6
          %v427 = vsel %vm406, %v426, %v425
          %v429 = vadd.f32 %v409, %v427
          %v430 = vlaneseq
          %v431 = vshrl.u32 %v430, 7
          %v432 = vsub.s32 2, %v431
          %v433 = vrot.slane %v351, %v432
          %v434 = vmul.f32 %v370, %v433
          %v435 = vmul.f32 %v375, %v433
          %v436 = vmul.f32 %v380, %v433
          %v437 = vmul.f32 %v385, %v433
          %v442 = vrot.slane %v434, 2
          %v443 = vrot.slane %v435, 1
          %v444 = vsel %vm400, %v443, %v442
          %v445 = vsel %vm403, %v436, %v444
          %v446 = vrot.slane %v437, 7
          %v447 = vsel %vm406, %v446, %v445
          %v449 = vadd.f32 %v429, %v447
          %451 = vset.pattern.permute.xlu0 0
          %452 = vperm.xlu0 %451, %v357
          %v453 = vpop.permute.xlu0 %452
          %456 = vset.pattern.permute.xlu0 0
          %457 = vperm.xlu0 %456, %v358
          %v458 = vpop.permute.xlu0 %457
          %461 = vset.pattern.permute.xlu0 0
          %462 = vperm.xlu0 %461, %v359
          %v463 = vpop.permute.xlu0 %462
          %466 = vset.pattern.permute.xlu0 0
          %467 = vperm.xlu0 %466, %v360
          %v468 = vpop.permute.xlu0 %467
          %v470 = vlaneseq
          %v471 = vshrl.u32 %v470, 7
          %v472 = vsub.s32 0, %v471
          %v473 = vrot.slane %v352, %v472
          %v474 = vmul.f32 %v453, %v473
          %v475 = vmul.f32 %v458, %v473
          %v476 = vmul.f32 %v463, %v473
          %v477 = vmul.f32 %v468, %v473
          %v482 = vrot.slane %v475, 7
          %v483 = vsel %vm400, %v482, %v474
          %v484 = vrot.slane %v476, 6
          %v485 = vsel %vm403, %v484, %v483
          %v486 = vrot.slane %v477, 5
          %v487 = vsel %vm406, %v486, %v485
          %v489 = vadd.f32 %v449, %v487
          %v490 = vlaneseq
          %v491 = vshrl.u32 %v490, 7
          %v492 = vsub.s32 1, %v491
          %v493 = vrot.slane %v352, %v492
          %v494 = vmul.f32 %v453, %v493
          %v495 = vmul.f32 %v458, %v493
          %v496 = vmul.f32 %v463, %v493
          %v497 = vmul.f32 %v468, %v493
          %v502 = vrot.slane %v494, 1
          %v503 = vsel %vm400, %v495, %v502
          %v504 = vrot.slane %v496, 7
          %v505 = vsel %vm403, %v504, %v503
          %v506 = vrot.slane %v497, 6
          %v507 = vsel %vm406, %v506, %v505
          %v509 = vadd.f32 %v489, %v507
          %510 = vset.pattern.permute.xlu0 1
          %511 = vperm.xlu0 %510, %v353
          %v512 = vpop.permute.xlu0 %511
          %514 = vset.pattern.permute.xlu0 1
          %515 = vperm.xlu0 %514, %v354
          %v516 = vpop.permute.xlu0 %515
          %518 = vset.pattern.permute.xlu0 1
          %519 = vperm.xlu0 %518, %v355
          %v520 = vpop.permute.xlu0 %519
          %522 = vset.pattern.permute.xlu0 1
          %523 = vperm.xlu0 %522, %v356
          %v524 = vpop.permute.xlu0 %523
          %v527 = vlaneseq
          %v528 = vshrl.u32 %v527, 7
          %v529 = vsub.s32 0, %v528
          %v530 = vrot.slane %v351, %v529
          %v531 = vlaneseq
          %v532 = vshrl.u32 %v531, 7
          %v533 = vsub.s32 4, %v532
          %v534 = vrot.slane %v351, %v533
          %v537 = vlaneseq
          %v538 = vshrl.u32 %v537, 7
          %v539 = vsub.s32 0, %v538
          %v540 = vrot.slane %v530, %v539
          %v541 = vlaneseq
          %v542 = vshrl.u32 %v541, 7
          %v543 = vsub.s32 0, %v542
          %v544 = vrot.slane %v534, %v543
          %547 = vrot.lane.b32.xlu0 %v540, 127
          %v548 = vpop.permute.xlu0 %547
          %549 = vrot.lane.b32.xlu0 %v544, 127
          %v550 = vpop.permute.xlu0 %549
          %vm551 = vcmask 1039360
          %v552 = vsel %vm551, %v548, %v550
          %v554 = vmul.f32 %v512, %v552
          %v555 = vmul.f32 %v516, %v552
          %v556 = vmul.f32 %v520, %v552
          %v557 = vmul.f32 %v524, %v552
          %v562 = vrot.slane %v555, 7
          %v563 = vsel %vm400, %v562, %v554
          %v564 = vrot.slane %v556, 6
          %v565 = vsel %vm403, %v564, %v563
          %v566 = vrot.slane %v557, 5
          %v567 = vsel %vm406, %v566, %v565
          %v569 = vadd.f32 %v509, %v567
          %v570 = vlaneseq
          %v571 = vshrl.u32 %v570, 7
          %v572 = vsub.s32 1, %v571
          %v573 = vrot.slane %v351, %v572
          %v574 = vlaneseq
          %v575 = vshrl.u32 %v574, 7
          %v576 = vsub.s32 5, %v575
          %v577 = vrot.slane %v351, %v576
          %v580 = vlaneseq
          %v581 = vshrl.u32 %v580, 7
          %v582 = vsub.s32 1, %v581
          %v583 = vrot.slane %v573, %v582
          %v584 = vlaneseq
          %v585 = vshrl.u32 %v584, 7
          %v586 = vsub.s32 1, %v585
          %v587 = vrot.slane %v577, %v586
          %590 = vrot.lane.b32.xlu0 %v583, 127
          %v591 = vpop.permute.xlu0 %590
          %592 = vrot.lane.b32.xlu0 %v587, 127
          %v593 = vpop.permute.xlu0 %592
          %v594 = vsel %vm551, %v591, %v593
          %v596 = vmul.f32 %v512, %v594
          %v597 = vmul.f32 %v516, %v594
          %v598 = vmul.f32 %v520, %v594
          %v599 = vmul.f32 %v524, %v594
          %v604 = vrot.slane %v596, 1
          %v605 = vsel %vm400, %v597, %v604
          %v606 = vrot.slane %v598, 7
          %v607 = vsel %vm403, %v606, %v605
          %v608 = vrot.slane %v599, 6
          %v609 = vsel %vm406, %v608, %v607
          %v611 = vadd.f32 %v569, %v609
          %v612 = vlaneseq
          %v613 = vshrl.u32 %v612, 7
          %v614 = vsub.s32 2, %v613
          %v615 = vrot.slane %v351, %v614
          %v616 = vlaneseq
          %v617 = vshrl.u32 %v616, 7
          %v618 = vsub.s32 6, %v617
          %v619 = vrot.slane %v351, %v618
          %v622 = vlaneseq
          %v623 = vshrl.u32 %v622, 7
          %v624 = vsub.s32 2, %v623
          %v625 = vrot.slane %v615, %v624
          %v626 = vlaneseq
          %v627 = vshrl.u32 %v626, 7
          %v628 = vsub.s32 2, %v627
          %v629 = vrot.slane %v619, %v628
          %632 = vrot.lane.b32.xlu0 %v625, 127
          %v633 = vpop.permute.xlu0 %632
          %634 = vrot.lane.b32.xlu0 %v629, 127
          %v635 = vpop.permute.xlu0 %634
          %v636 = vsel %vm551, %v633, %v635
          %v638 = vmul.f32 %v512, %v636
          %v639 = vmul.f32 %v516, %v636
          %v640 = vmul.f32 %v520, %v636
          %v641 = vmul.f32 %v524, %v636
          %v646 = vrot.slane %v638, 2
          %v647 = vrot.slane %v639, 1
          %v648 = vsel %vm400, %v647, %v646
          %v649 = vsel %vm403, %v640, %v648
          %v650 = vrot.slane %v641, 7
          %v651 = vsel %vm406, %v650, %v649
          %v653 = vadd.f32 %v611, %v651
          %654 = vset.pattern.permute.xlu0 1
          %655 = vperm.xlu0 %654, %v357
          %v656 = vpop.permute.xlu0 %655
          %658 = vset.pattern.permute.xlu0 1
          %659 = vperm.xlu0 %658, %v358
          %v660 = vpop.permute.xlu0 %659
          %662 = vset.pattern.permute.xlu0 1
          %663 = vperm.xlu0 %662, %v359
          %v664 = vpop.permute.xlu0 %663
          %666 = vset.pattern.permute.xlu0 1
          %667 = vperm.xlu0 %666, %v360
          %v668 = vpop.permute.xlu0 %667
          %v671 = vlaneseq
          %v672 = vshrl.u32 %v671, 7
          %v673 = vsub.s32 0, %v672
          %v674 = vrot.slane %v352, %v673
          %v675 = vlaneseq
          %v676 = vshrl.u32 %v675, 7
          %v677 = vsub.s32 2, %v676
          %v678 = vrot.slane %v352, %v677
          %v681 = vlaneseq
          %v682 = vshrl.u32 %v681, 7
          %v683 = vsub.s32 0, %v682
          %v684 = vrot.slane %v674, %v683
          %v685 = vlaneseq
          %v686 = vshrl.u32 %v685, 7
          %v687 = vsub.s32 0, %v686
          %v688 = vrot.slane %v678, %v687
          %691 = vrot.lane.b32.xlu0 %v684, 127
          %v692 = vpop.permute.xlu0 %691
          %693 = vrot.lane.b32.xlu0 %v688, 127
          %v694 = vpop.permute.xlu0 %693
          %v695 = vsel %vm551, %v692, %v694
          %v697 = vmul.f32 %v656, %v695
          %v698 = vmul.f32 %v660, %v695
          %v699 = vmul.f32 %v664, %v695
          %v700 = vmul.f32 %v668, %v695
          %v705 = vrot.slane %v698, 7
          %v706 = vsel %vm400, %v705, %v697
          %v707 = vrot.slane %v699, 6
          %v708 = vsel %vm403, %v707, %v706
          %v709 = vrot.slane %v700, 5
          %v710 = vsel %vm406, %v709, %v708
          %v712 = vadd.f32 %v653, %v710
          %v713 = vlaneseq
          %v714 = vshrl.u32 %v713, 7
          %v715 = vsub.s32 1, %v714
          %v716 = vrot.slane %v352, %v715
          %v717 = vlaneseq
          %v718 = vshrl.u32 %v717, 7
          %v719 = vsub.s32 3, %v718
          %v720 = vrot.slane %v352, %v719
          %v723 = vlaneseq
          %v724 = vshrl.u32 %v723, 7
          %v725 = vsub.s32 1, %v724
          %v726 = vrot.slane %v716, %v725
          %v727 = vlaneseq
          %v728 = vshrl.u32 %v727, 7
          %v729 = vsub.s32 1, %v728
          %v730 = vrot.slane %v720, %v729
          %733 = vrot.lane.b32.xlu0 %v726, 127
          %v734 = vpop.permute.xlu0 %733
          %735 = vrot.lane.b32.xlu0 %v730, 127
          %v736 = vpop.permute.xlu0 %735
          %v737 = vsel %vm551, %v734, %v736
          %v739 = vmul.f32 %v656, %v737
          %v740 = vmul.f32 %v660, %v737
          %v741 = vmul.f32 %v664, %v737
          %v742 = vmul.f32 %v668, %v737
          %v747 = vrot.slane %v739, 1
          %v748 = vsel %vm400, %v740, %v747
          %v749 = vrot.slane %v741, 7
          %v750 = vsel %vm403, %v749, %v748
          %v751 = vrot.slane %v742, 6
          %v752 = vsel %vm406, %v751, %v750
          %v754 = vadd.f32 %v712, %v752
          %755 = vset.pattern.permute.xlu0 2
          %756 = vperm.xlu0 %755, %v353
          %v757 = vpop.permute.xlu0 %756
          %759 = vset.pattern.permute.xlu0 2
          %760 = vperm.xlu0 %759, %v354
          %v761 = vpop.permute.xlu0 %760
          %763 = vset.pattern.permute.xlu0 2
          %764 = vperm.xlu0 %763, %v355
          %v765 = vpop.permute.xlu0 %764
          %767 = vset.pattern.permute.xlu0 2
          %768 = vperm.xlu0 %767, %v356
          %v769 = vpop.permute.xlu0 %768
          %771 = vrot.lane.b32.xlu0 %v540, 126
          %v772 = vpop.permute.xlu0 %771
          %773 = vrot.lane.b32.xlu0 %v544, 126
          %v774 = vpop.permute.xlu0 %773
          %vm775 = vcmask 1031168
          %v776 = vsel %vm775, %v772, %v774
          %v778 = vmul.f32 %v757, %v776
          %v779 = vmul.f32 %v761, %v776
          %v780 = vmul.f32 %v765, %v776
          %v781 = vmul.f32 %v769, %v776
          %v786 = vrot.slane %v779, 7
          %v787 = vsel %vm400, %v786, %v778
          %v788 = vrot.slane %v780, 6
          %v789 = vsel %vm403, %v788, %v787
          %v790 = vrot.slane %v781, 5
          %v791 = vsel %vm406, %v790, %v789
          %v793 = vadd.f32 %v754, %v791
          %794 = vrot.lane.b32.xlu0 %v583, 126
          %v795 = vpop.permute.xlu0 %794
          %796 = vrot.lane.b32.xlu0 %v587, 126
          %v797 = vpop.permute.xlu0 %796
          %v798 = vsel %vm775, %v795, %v797
          %v800 = vmul.f32 %v757, %v798
          %v801 = vmul.f32 %v761, %v798
          %v802 = vmul.f32 %v765, %v798
          %v803 = vmul.f32 %v769, %v798
          %v808 = vrot.slane %v800, 1
          %v809 = vsel %vm400, %v801, %v808
          %v810 = vrot.slane %v802, 7
          %v811 = vsel %vm403, %v810, %v809
          %v812 = vrot.slane %v803, 6
          %v813 = vsel %vm406, %v812, %v811
          %v815 = vadd.f32 %v793, %v813
          %816 = vrot.lane.b32.xlu0 %v625, 126
          %v817 = vpop.permute.xlu0 %816
          %818 = vrot.lane.b32.xlu0 %v629, 126
          %v819 = vpop.permute.xlu0 %818
          %v820 = vsel %vm775, %v817, %v819
          %v822 = vmul.f32 %v757, %v820
          %v823 = vmul.f32 %v761, %v820
          %v824 = vmul.f32 %v765, %v820
          %v825 = vmul.f32 %v769, %v820
          %v830 = vrot.slane %v822, 2
          %v831 = vrot.slane %v823, 1
          %v832 = vsel %vm400, %v831, %v830
          %v833 = vsel %vm403, %v824, %v832
          %v834 = vrot.slane %v825, 7
          %v835 = vsel %vm406, %v834, %v833
          %v837 = vadd.f32 %v815, %v835
          %838 = vset.pattern.permute.xlu0 2
          %839 = vperm.xlu0 %838, %v357
          %v840 = vpop.permute.xlu0 %839
          %842 = vset.pattern.permute.xlu0 2
          %843 = vperm.xlu0 %842, %v358
          %v844 = vpop.permute.xlu0 %843
          %846 = vset.pattern.permute.xlu0 2
          %847 = vperm.xlu0 %846, %v359
          %v848 = vpop.permute.xlu0 %847
          %850 = vset.pattern.permute.xlu0 2
          %851 = vperm.xlu0 %850, %v360
          %v852 = vpop.permute.xlu0 %851
          %854 = vrot.lane.b32.xlu0 %v684, 126
          %v855 = vpop.permute.xlu0 %854
          %856 = vrot.lane.b32.xlu0 %v688, 126
          %v857 = vpop.permute.xlu0 %856
          %v858 = vsel %vm775, %v855, %v857
          %v860 = vmul.f32 %v840, %v858
          %v861 = vmul.f32 %v844, %v858
          %v862 = vmul.f32 %v848, %v858
          %v863 = vmul.f32 %v852, %v858
          %v868 = vrot.slane %v861, 7
          %v869 = vsel %vm400, %v868, %v860
          %v870 = vrot.slane %v862, 6
          %v871 = vsel %vm403, %v870, %v869
          %v872 = vrot.slane %v863, 5
          %v873 = vsel %vm406, %v872, %v871
          %v875 = vadd.f32 %v837, %v873
          %876 = vrot.lane.b32.xlu0 %v726, 126
          %v877 = vpop.permute.xlu0 %876
          %878 = vrot.lane.b32.xlu0 %v730, 126
          %v879 = vpop.permute.xlu0 %878
          %v880 = vsel %vm775, %v877, %v879
          %v882 = vmul.f32 %v840, %v880
          %v883 = vmul.f32 %v844, %v880
          %v884 = vmul.f32 %v848, %v880
          %v885 = vmul.f32 %v852, %v880
          %v890 = vrot.slane %v882, 1
          %v891 = vsel %vm400, %v883, %v890
          %v892 = vrot.slane %v884, 7
          %v893 = vsel %vm403, %v892, %v891
          %v894 = vrot.slane %v885, 6
          %v895 = vsel %vm406, %v894, %v893
          %v897 = vadd.f32 %v875, %v895
          %898 = vset.pattern.permute.xlu0 3
          %899 = vperm.xlu0 %898, %v353
          %v900 = vpop.permute.xlu0 %899
          %902 = vset.pattern.permute.xlu0 3
          %903 = vperm.xlu0 %902, %v354
          %v904 = vpop.permute.xlu0 %903
          %906 = vset.pattern.permute.xlu0 3
          %907 = vperm.xlu0 %906, %v355
          %v908 = vpop.permute.xlu0 %907
          %910 = vset.pattern.permute.xlu0 3
          %911 = vperm.xlu0 %910, %v356
          %v912 = vpop.permute.xlu0 %911
          %914 = vrot.lane.b32.xlu0 %v540, 125
          %v915 = vpop.permute.xlu0 %914
          %916 = vrot.lane.b32.xlu0 %v544, 125
          %v917 = vpop.permute.xlu0 %916
          %vm918 = vcmask 1022976
          %v919 = vsel %vm918, %v915, %v917
          %v921 = vmul.f32 %v900, %v919
          %v922 = vmul.f32 %v904, %v919
          %v923 = vmul.f32 %v908, %v919
          %v924 = vmul.f32 %v912, %v919
          %v929 = vrot.slane %v922, 7
          %v930 = vsel %vm400, %v929, %v921
          %v931 = vrot.slane %v923, 6
          %v932 = vsel %vm403, %v931, %v930
          %v933 = vrot.slane %v924, 5
          %v934 = vsel %vm406, %v933, %v932
          %v936 = vadd.f32 %v897, %v934
          %937 = vrot.lane.b32.xlu0 %v583, 125
          %v938 = vpop.permute.xlu0 %937
          %939 = vrot.lane.b32.xlu0 %v587, 125
          %v940 = vpop.permute.xlu0 %939
          %v941 = vsel %vm918, %v938, %v940
          %v943 = vmul.f32 %v900, %v941
          %v944 = vmul.f32 %v904, %v941
          %v945 = vmul.f32 %v908, %v941
          %v946 = vmul.f32 %v912, %v941
          %v951 = vrot.slane %v943, 1
          %v952 = vsel %vm400, %v944, %v951
          %v953 = vrot.slane %v945, 7
          %v954 = vsel %vm403, %v953, %v952
          %v955 = vrot.slane %v946, 6
          %v956 = vsel %vm406, %v955, %v954
          %v958 = vadd.f32 %v936, %v956
          %959 = vrot.lane.b32.xlu0 %v625, 125
          %v960 = vpop.permute.xlu0 %959
          %961 = vrot.lane.b32.xlu0 %v629, 125
          %v962 = vpop.permute.xlu0 %961
          %v963 = vsel %vm918, %v960, %v962
          %v965 = vmul.f32 %v900, %v963
          %v966 = vmul.f32 %v904, %v963
          %v967 = vmul.f32 %v908, %v963
          %v968 = vmul.f32 %v912, %v963
          %v973 = vrot.slane %v965, 2
          %v974 = vrot.slane %v966, 1
          %v975 = vsel %vm400, %v974, %v973
          %v976 = vsel %vm403, %v967, %v975
          %v977 = vrot.slane %v968, 7
          %v978 = vsel %vm406, %v977, %v976
          %v980 = vadd.f32 %v958, %v978
          %981 = vset.pattern.permute.xlu0 3
          %982 = vperm.xlu0 %981, %v357
          %v983 = vpop.permute.xlu0 %982
          %985 = vset.pattern.permute.xlu0 3
          %986 = vperm.xlu0 %985, %v358
          %v987 = vpop.permute.xlu0 %986
          %989 = vset.pattern.permute.xlu0 3
          %990 = vperm.xlu0 %989, %v359
          %v991 = vpop.permute.xlu0 %990
          %993 = vset.pattern.permute.xlu0 3
          %994 = vperm.xlu0 %993, %v360
          %v995 = vpop.permute.xlu0 %994
          %997 = vrot.lane.b32.xlu0 %v684, 125
          %v998 = vpop.permute.xlu0 %997
          %999 = vrot.lane.b32.xlu0 %v688, 125
          %v1000 = vpop.permute.xlu0 %999
          %v1001 = vsel %vm918, %v998, %v1000
          %v1003 = vmul.f32 %v983, %v1001
          %v1004 = vmul.f32 %v987, %v1001
          %v1005 = vmul.f32 %v991, %v1001
          %v1006 = vmul.f32 %v995, %v1001
          %v1011 = vrot.slane %v1004, 7
          %v1012 = vsel %vm400, %v1011, %v1003
          %v1013 = vrot.slane %v1005, 6
          %v1014 = vsel %vm403, %v1013, %v1012
          %v1015 = vrot.slane %v1006, 5
          %v1016 = vsel %vm406, %v1015, %v1014
          %v1018 = vadd.f32 %v980, %v1016
          %1019 = vrot.lane.b32.xlu0 %v726, 125
          %v1020 = vpop.permute.xlu0 %1019
          %1021 = vrot.lane.b32.xlu0 %v730, 125
          %v1022 = vpop.permute.xlu0 %1021
          %v1023 = vsel %vm918, %v1020, %v1022
          %v1025 = vmul.f32 %v983, %v1023
          %v1026 = vmul.f32 %v987, %v1023
          %v1027 = vmul.f32 %v991, %v1023
          %v1028 = vmul.f32 %v995, %v1023
          %v1033 = vrot.slane %v1025, 1
          %v1034 = vsel %vm400, %v1026, %v1033
          %v1035 = vrot.slane %v1027, 7
          %v1036 = vsel %vm403, %v1035, %v1034
          %v1037 = vrot.slane %v1028, 6
          %v1038 = vsel %vm406, %v1037, %v1036
          %v1040 = vadd.f32 %v1018, %v1038
          %1041 = vset.pattern.permute.xlu0 4
          %1042 = vperm.xlu0 %1041, %v353
          %v1043 = vpop.permute.xlu0 %1042
          %1045 = vset.pattern.permute.xlu0 4
          %1046 = vperm.xlu0 %1045, %v354
          %v1047 = vpop.permute.xlu0 %1046
          %1049 = vset.pattern.permute.xlu0 4
          %1050 = vperm.xlu0 %1049, %v355
          %v1051 = vpop.permute.xlu0 %1050
          %1053 = vset.pattern.permute.xlu0 4
          %1054 = vperm.xlu0 %1053, %v356
          %v1055 = vpop.permute.xlu0 %1054
          %1057 = vrot.lane.b32.xlu0 %v540, 124
          %v1058 = vpop.permute.xlu0 %1057
          %1059 = vrot.lane.b32.xlu0 %v544, 124
          %v1060 = vpop.permute.xlu0 %1059
          %vm1061 = vcmask 1014784
          %v1062 = vsel %vm1061, %v1058, %v1060
          %v1064 = vmul.f32 %v1043, %v1062
          %v1065 = vmul.f32 %v1047, %v1062
          %v1066 = vmul.f32 %v1051, %v1062
          %v1067 = vmul.f32 %v1055, %v1062
          %v1072 = vrot.slane %v1065, 7
          %v1073 = vsel %vm400, %v1072, %v1064
          %v1074 = vrot.slane %v1066, 6
          %v1075 = vsel %vm403, %v1074, %v1073
          %v1076 = vrot.slane %v1067, 5
          %v1077 = vsel %vm406, %v1076, %v1075
          %v1079 = vadd.f32 %v1040, %v1077
          %1080 = vrot.lane.b32.xlu0 %v583, 124
          %v1081 = vpop.permute.xlu0 %1080
          %1082 = vrot.lane.b32.xlu0 %v587, 124
          %v1083 = vpop.permute.xlu0 %1082
          %v1084 = vsel %vm1061, %v1081, %v1083
          %v1086 = vmul.f32 %v1043, %v1084
          %v1087 = vmul.f32 %v1047, %v1084
          %v1088 = vmul.f32 %v1051, %v1084
          %v1089 = vmul.f32 %v1055, %v1084
          %v1094 = vrot.slane %v1086, 1
          %v1095 = vsel %vm400, %v1087, %v1094
          %v1096 = vrot.slane %v1088, 7
          %v1097 = vsel %vm403, %v1096, %v1095
          %v1098 = vrot.slane %v1089, 6
          %v1099 = vsel %vm406, %v1098, %v1097
          %v1101 = vadd.f32 %v1079, %v1099
          %1102 = vrot.lane.b32.xlu0 %v625, 124
          %v1103 = vpop.permute.xlu0 %1102
          %1104 = vrot.lane.b32.xlu0 %v629, 124
          %v1105 = vpop.permute.xlu0 %1104
          %v1106 = vsel %vm1061, %v1103, %v1105
          %v1108 = vmul.f32 %v1043, %v1106
          %v1109 = vmul.f32 %v1047, %v1106
          %v1110 = vmul.f32 %v1051, %v1106
          %v1111 = vmul.f32 %v1055, %v1106
          %v1116 = vrot.slane %v1108, 2
          %v1117 = vrot.slane %v1109, 1
          %v1118 = vsel %vm400, %v1117, %v1116
          %v1119 = vsel %vm403, %v1110, %v1118
          %v1120 = vrot.slane %v1111, 7
          %v1121 = vsel %vm406, %v1120, %v1119
          %v1123 = vadd.f32 %v1101, %v1121
          %1124 = vset.pattern.permute.xlu0 4
          %1125 = vperm.xlu0 %1124, %v357
          %v1126 = vpop.permute.xlu0 %1125
          %1128 = vset.pattern.permute.xlu0 4
          %1129 = vperm.xlu0 %1128, %v358
          %v1130 = vpop.permute.xlu0 %1129
          %1132 = vset.pattern.permute.xlu0 4
          %1133 = vperm.xlu0 %1132, %v359
          %v1134 = vpop.permute.xlu0 %1133
          %1136 = vset.pattern.permute.xlu0 4
          %1137 = vperm.xlu0 %1136, %v360
          %v1138 = vpop.permute.xlu0 %1137
          %1140 = vrot.lane.b32.xlu0 %v684, 124
          %v1141 = vpop.permute.xlu0 %1140
          %1142 = vrot.lane.b32.xlu0 %v688, 124
          %v1143 = vpop.permute.xlu0 %1142
          %v1144 = vsel %vm1061, %v1141, %v1143
          %v1146 = vmul.f32 %v1126, %v1144
          %v1147 = vmul.f32 %v1130, %v1144
          %v1148 = vmul.f32 %v1134, %v1144
          %v1149 = vmul.f32 %v1138, %v1144
          %v1154 = vrot.slane %v1147, 7
          %v1155 = vsel %vm400, %v1154, %v1146
          %v1156 = vrot.slane %v1148, 6
          %v1157 = vsel %vm403, %v1156, %v1155
          %v1158 = vrot.slane %v1149, 5
          %v1159 = vsel %vm406, %v1158, %v1157
          %v1161 = vadd.f32 %v1123, %v1159
          %1162 = vrot.lane.b32.xlu0 %v726, 124
          %v1163 = vpop.permute.xlu0 %1162
          %1164 = vrot.lane.b32.xlu0 %v730, 124
          %v1165 = vpop.permute.xlu0 %1164
          %v1166 = vsel %vm1061, %v1163, %v1165
          %v1168 = vmul.f32 %v1126, %v1166
          %v1169 = vmul.f32 %v1130, %v1166
          %v1170 = vmul.f32 %v1134, %v1166
          %v1171 = vmul.f32 %v1138, %v1166
          %v1176 = vrot.slane %v1168, 1
          %v1177 = vsel %vm400, %v1169, %v1176
          %v1178 = vrot.slane %v1170, 7
          %v1179 = vsel %vm403, %v1178, %v1177
          %v1180 = vrot.slane %v1171, 6
          %v1181 = vsel %vm406, %v1180, %v1179
          %v1183 = vadd.f32 %v1161, %v1181
          %v1184 = vtanh.pop %v1183
          %1185 = vst [vmem:[%s288] sm:$0xf] %v1184
        $region44: #{tpu_custom_call.1} parent=39 // pred_fallthru
          _
        %v1186 = vld [vmem:[#allocation2 + $0x4] sm:$0x7]
        %v1187 = vld [vmem:[#allocation3 + $0x2] sm:$0x3]
        %s1188 = scalar_select %p347, 1, 0
        %v1189 = vstv %s1188
        %vm1190 = vcmp.eq.s32.totalorder %v1189, 1
        %v1191 = vsel %vm1190, %v1186, 0.0
        %vm1192 = vcmask 10240
        %1193 = vst.msk [vmem:[#allocation2] sm:$0x7] %vm1192, %v1191
        %v1194 = vsel %vm1190, %v1187, 0.0
        %vm1195 = vcmask 9216
        %1196 = vst.msk [vmem:[#allocation3] sm:$0x3] %vm1195, %v1194
        %v1197 = vrot.slane %v330, 4
        %vm1198 = vcmask 15360
        %v1199 = vsel %vm1198, %v1197, %v330
        %vm1201 = vcmask 1042448
        %vm1202 = vcmask 14340
        %vm1203 = vmor %vm1202, %vm1201
        %1204 = vst.msk [vmem:[#allocation2] sm:$0x77] %vm1203, %v1199
        %v1205 = vrot.slane %v343, 6
        %v1206 = vsel %vm1198, %v1205, %v343
        %vm1208 = vcmask 1041424
        %vm1209 = vcmask 11266
        %vm1210 = vmor %vm1209, %vm1208
        %1211 = vst.msk [vmem:[#allocation3] sm:$0xf] %vm1210, %v1206
        %s1212 = sand.u32 %s174, 1
        %s1213 = scalar_lea.sflag [#allocation5], %s1212
        %s1214 = sand.u32 %s174, 1
        %s1215 = smul.addr %s1214, 4
        %s1216 = scalar_lea.vmem [#allocation4], %s1215
        // Predicated region
        $region45: #{tpu_custom_call.1} parent=39 // pred_check
          %p1217 = pneg %p184
        $region46: #{tpu_custom_call.1} parent=39 // pred_check_branch
          %1219 = sbr.rel (%p1217) target = $region48
        $region47: #{tpu_custom_call.1} parent=39 // pred_region
          %s1220 = ssub.s32 %s24, 1
          %p1221 = scmp.gt.s32.totalorder %s1220, 0
          %s1222 = scalar_select %p1221, %s1220, 0
          %s1224 = ssub.s32 64, 64
          %1225 = vsyncadd %s1213, %s1224
          %s1226 = smul.addr %s23, 4
          %s1227 = sadd.s32 %s1222, %s1226
          %s1228 = smul.addr %s1227, 64
          %s1229 = scalar_lea.hbm %s5, %s1228
          %s1231 = sshll.u32 %s1216, 4
          %s1232 = int_to_ptr.vmem [resolvable:$true] %s1231
          %1234 = dma.vmem_to_hbm [thread:$0]  %s1232, 64, %s1229, %s1213
        $region48: #{tpu_custom_call.1} parent=39 // pred_fallthru
          _
      $region40: #{tpu_custom_call.1} parent=5 // pred_fallthru
        _
      %p1235 = scmp.le.s32.totalorder 2, %s14
      // Predicated region
      $region49: #{tpu_custom_call.1} parent=5 // pred_check
        %p1236 = pneg %p1235
      $region50: #{tpu_custom_call.1} parent=5 // pred_check_branch
        %1238 = sbr.rel (%p1236) target = $region52
      $region51: #{tpu_custom_call.1} parent=5 // pred_region
        %s1239 = ssub.s32 %s14, 2
        // Predicated region
        $region53: #{tpu_custom_call.1} parent=51 // pred_check
          %p1240 = pneg %p190
        $region54: #{tpu_custom_call.1} parent=51 // pred_check_branch
          %1242 = sbr.rel (%p1240) target = $region56
        $region55: #{tpu_custom_call.1} parent=51 // pred_region
          %s1243 = sand.u32 %s175, 1
          %s1244 = scalar_lea.sflag [#allocation5], %s1243
          %s1245 = sand.u32 %s175, 1
          %s1246 = smul.addr %s1245, 4
          %s1247 = scalar_lea.vmem [#allocation4], %s1246
          %1248 = dma.done %s1244, 64
        $region56: #{tpu_custom_call.1} parent=51 // pred_fallthru
          _
      $region52: #{tpu_custom_call.1} parent=5 // pred_fallthru
        _
    $region6: #{tpu_custom_call.1} parent=1 // loop_footer
      %s18 = sadd.s32 1, %s14
    $region7: #{tpu_custom_call.1} parent=1 // loop_footer_branch
      %13 = sbr.rel target = $region3
    $region8: #{tpu_custom_call.1} parent=1 // loop_exit
      _
    %1249 = vsyncpa [#allocation5], 1
    %s1250 = scalar_lea.sflag [#allocation5], 1
    %1251 = vsyncpa %s1250, 1

</llo_original>
